<compile_context>
chip_gen: v7x
topology: tpu7x:2x2x1
jax: 0.10.0
libtpu: 0.0.40
codegen_flags: <defaults>
</compile_context>

<pallas_src>
import jax
import jax.numpy as jnp
import numpy as np
from jax.experimental import pallas as pl
from jax.experimental.pallas import tpu as pltpu

# ---------------- model dims (small, consistent with the module) ------------
B = 2          # batch
L = 8          # max_len
V = 16         # n_vocab
D = 32         # d_model
K = 5          # conv kernel size
N_CONV = 10    # 5 ResBlocks x 2 Conv1d each
ROWS = B * L   # stacked (batch, position) rows


# ------------------------------ Pallas kernel -------------------------------
def disc_kernel(x_ref, w1_ref, b1_ref, wc_ref, bc_ref, w2_ref, sel_ref,
                b2_ref, out_ref):
    # x_ref:   (ROWS, V)        batch stacked along sublanes
    # w1_ref:  (V, D)           vocab2embed weight (pre-transposed)
    # b1_ref:  (1, D)
    # wc_ref:  (N_CONV, D, K*D) fused per-conv tap weights  W_cat[i, k*D + o]
    # bc_ref:  (N_CONV, 1, D)
    # w2_ref:  (ROWS, D)        conv2logit weight in (l, d) layout, tiled per batch
    # sel_ref: (B, ROWS)        per-batch row selector (segment reduction)
    # b2_ref:  (1, 1)
    # out_ref: (B, 1)
    h = jnp.dot(x_ref[...], w1_ref[...],
                preferred_element_type=jnp.float32) + b1_ref[...]      # (ROWS, D)

    # Hoisted per-tap validity masks.  `local` is the position inside each
    # batch element; tap k reads z[local + k - 2], valid iff 0 <= local+k-2 < L.
    # This also masks out any cross-batch rows pulled in by the circular roll.
    local = jax.lax.broadcasted_iota(jnp.int32, (ROWS, D), 0) % L
    masks = [(local >= (2 - k)) & (local < (L + 2 - k)) for k in range(K)]

    def conv1d(z, ci):
        # One lane-dense MXU matmul covers all K taps: (ROWS, D) @ (D, K*D).
        y = jnp.dot(z, wc_ref[ci], preferred_element_type=jnp.float32)  # (ROWS, K*D)
        acc = None
        for k in range(K):
            chunk = y[:, k * D:(k + 1) * D]                             # (ROWS, D)
            if k == 2:
                term = chunk                    # zero shift, always valid
            else:
                shifted = pltpu.roll(chunk, shift=(2 - k) % ROWS, axis=0)
                term = jnp.where(masks[k], shifted, 0.0)
            acc = term if acc is None else acc + term
        return acc + bc_ref[ci]

    for r in range(5):  # 5 ResBlocks: x + 0.3 * Conv(ReLU(Conv(ReLU(x))))
        y = conv1d(jnp.maximum(h, 0.0), 2 * r)
        y = conv1d(jnp.maximum(y, 0.0), 2 * r + 1)
        h = h + 0.3 * y

    # conv2logit with the channel-major flatten folded into w2_ref's layout.
    prod = h * w2_ref[...]                                              # (ROWS, D)
    per_batch = jnp.dot(sel_ref[...], prod,
                        preferred_element_type=jnp.float32)             # (B, D)
    out_ref[...] = jnp.sum(per_batch, axis=1, keepdims=True) + b2_ref[...]


def test_discriminator(x, w1_t, b1, conv_w, conv_b, w2, b2):
    """x: (B, L, V) float32 -> (B, 1) float32."""
    # ---- glue: reshuffle parameters into kernel-friendly layouts ----
    x2d = x.reshape(ROWS, V)
    b1_k = b1.reshape(1, D)
    # torch Conv1d weight (D_out, D_in, K) -> (conv, D_in, K*D_out), lane-dense
    wc_k = jnp.transpose(conv_w, (0, 2, 3, 1)).reshape(N_CONV, D, K * D)
    wc_k = wc_k.astype(jnp.float32)
    bc_k = conv_b.reshape(N_CONV, 1, D)
    # torch flatten of (B, D, L) indexes d*L + l -> (L, D) weight, tiled over batch
    w2_k = jnp.tile(w2.reshape(D, L).T, (B, 1))                         # (ROWS, D)
    b2_k = b2.reshape(1, 1)
    # per-batch row selector for the final segment reduction
    sel = (np.arange(ROWS)[None, :] // L ==
           np.arange(B)[:, None]).astype(np.float32)                    # (B, ROWS)
    sel = jnp.asarray(sel)

    # Single invocation (no grid): everything fits trivially in VMEM (<1 MiB).
    return pl.pallas_call(
        disc_kernel,
        out_shape=jax.ShapeDtypeStruct((B, 1), jnp.float32),
    )(x2d, w1_t, b1_k, wc_k, bc_k, w2_k, sel, b2_k)


# --------------------------- pure-JAX reference ------------------------------
def ref_forward(x, w1_t, b1, conv_w, conv_b, w2, b2):
    with jax.default_matmul_precision("highest"):   # trustworthy f32 reference
        h = x @ w1_t + b1                       # (B, L, D)
        h = jnp.swapaxes(h, 1, 2)               # (B, D, L)  torch transpose(1, 2)

        def conv1d(z, w, bb):                   # z: (B, D, L), w: (D, D, K)
            zp = jnp.pad(z, ((0, 0), (0, 0), (2, 2)))
            out = jnp.zeros_like(z)
            for k in range(K):
                out = out + jnp.einsum('bil,oi->bol', zp[:, :, k:k + L], w[:, :, k])
            return out + bb[None, :, None]

        for r in range(5):
            y = conv1d(jnp.maximum(h, 0.0), conv_w[2 * r], conv_b[2 * r])
            y = conv1d(jnp.maximum(y, 0.0), conv_w[2 * r + 1], conv_b[2 * r + 1])
            h = h + 0.3 * y

        flat = h.reshape(B, D * L)              # channel-major flatten
        return flat @ w2.T + b2                 # (B, 1)


if __name__ == "__main__":
    key = jax.random.PRNGKey(0)
    keys = jax.random.split(key, 8)

    x = jax.random.normal(keys[0], (B, L, V), jnp.float32)

    # deterministic synthetic parameters (shapes from the module __init__)
    w1_t = 0.1 * jax.random.normal(keys[1], (V, D), jnp.float32)        # Linear(V, D).weight.T
    b1 = 0.1 * jax.random.normal(keys[2], (D,), jnp.float32)
    conv_w = 0.1 * jax.random.normal(keys[3], (N_CONV, D, D, K), jnp.float32)  # Conv1d weights
    conv_b = 0.1 * jax.random.normal(keys[4], (N_CONV, D), jnp.float32)
    w2 = 0.05 * jax.random.normal(keys[5], (1, L * D), jnp.float32)     # Linear(L*D, 1).weight
    b2 = 0.1 * jax.random.normal(keys[6], (1,), jnp.float32)

    out = test_discriminator(x, w1_t, b1, conv_w, conv_b, w2, b2)
    out = jax.block_until_ready(out)

    ref = ref_forward(x, w1_t, b1, conv_w, conv_b, w2, b2)
    np.testing.assert_allclose(np.asarray(out), np.asarray(ref),
                               rtol=5e-2, atol=2e-2)
    print("KERNEL_OK")
</pallas_src>

<mosaic_0001>
module attributes {stable_mosaic.version = 11 : i64} {
  func.func @disc_kernel(%arg0: memref<16x16xf32, #tpu.memory_space<vmem>>, %arg1: memref<16x32xf32, #tpu.memory_space<vmem>>, %arg2: memref<1x32xf32, #tpu.memory_space<vmem>>, %arg3: memref<10x32x160xf32, #tpu.memory_space<vmem>>, %arg4: memref<10x1x32xf32, #tpu.memory_space<vmem>>, %arg5: memref<16x32xf32, #tpu.memory_space<vmem>>, %arg6: memref<2x16xf32, #tpu.memory_space<vmem>>, %arg7: memref<1x1xf32, #tpu.memory_space<vmem>>, %arg8: memref<2x1xf32, #tpu.memory_space<vmem>>) attributes {dimension_semantics = [], scalar_prefetch = 0 : i64, scratch_operands = 0 : i64, tpu.core_type = #tpu.core_type<tc>} {
    %c0 = arith.constant 0 : index
    %c0_0 = arith.constant 0 : index
    %0 = vector.load %arg0[%c0, %c0_0] : memref<16x16xf32, #tpu.memory_space<vmem>>, vector<16x16xf32>
    %c0_1 = arith.constant 0 : index
    %c0_2 = arith.constant 0 : index
    %1 = vector.load %arg1[%c0_1, %c0_2] : memref<16x32xf32, #tpu.memory_space<vmem>>, vector<16x32xf32>
    %cst = arith.constant dense<0.000000e+00> : vector<16x32xf32>
    %2 = tpu.matmul %0, %1, %cst {dimension_numbers = #tpu.dot_dimension_numbers<[1], [0], [0], [1], [0, 0, 1, 1], [], []>} : vector<16x16xf32>, vector<16x32xf32>, vector<16x32xf32> -> vector<16x32xf32>
    %c0_3 = arith.constant 0 : index
    %c0_4 = arith.constant 0 : index
    %3 = vector.load %arg2[%c0_3, %c0_4] : memref<1x32xf32, #tpu.memory_space<vmem>>, vector<1x32xf32>
    %4 = vector.broadcast %3 : vector<1x32xf32> to vector<16x32xf32>
    %5 = arith.addf %2, %4 : vector<16x32xf32>
    %6 = tpu.iota {dimensions = array<i32: 0>} : vector<16x32xi32>
    %c8_i32 = arith.constant 8 : i32
    %c0_i32 = arith.constant 0 : i32
    %7 = arith.cmpi eq, %c8_i32, %c0_i32 : i32
    %c1_i32 = arith.constant 1 : i32
    %8 = arith.select %7, %c1_i32, %c8_i32 : i32
    %9 = vector.broadcast %8 : i32 to vector<16x32xi32>
    %10 = arith.remsi %6, %9 : vector<16x32xi32>
    %c0_i32_5 = arith.constant 0 : i32
    %11 = vector.broadcast %c0_i32_5 : i32 to vector<16x32xi32>
    %12 = arith.cmpi ne, %10, %11 : vector<16x32xi32>
    %c0_i32_6 = arith.constant 0 : i32
    %13 = vector.broadcast %c0_i32_6 : i32 to vector<16x32xi32>
    %14 = arith.cmpi slt, %10, %13 : vector<16x32xi32>
    %c0_i32_7 = arith.constant 0 : i32
    %15 = arith.cmpi slt, %8, %c0_i32_7 : i32
    %16 = vector.broadcast %15 : i1 to vector<16x32xi1>
    %17 = vector.broadcast %16 : vector<16x32xi1> to vector<16x32xi1>
    %18 = arith.xori %14, %17 : vector<16x32xi1>
    %19 = arith.andi %18, %12 : vector<16x32xi1>
    %20 = vector.broadcast %8 : i32 to vector<16x32xi32>
    %21 = arith.addi %10, %20 : vector<16x32xi32>
    %22 = arith.select %19, %21, %10 : vector<16x32xi1>, vector<16x32xi32>
    %c2_i32 = arith.constant 2 : i32
    %23 = vector.broadcast %c2_i32 : i32 to vector<16x32xi32>
    %24 = arith.cmpi sge, %22, %23 : vector<16x32xi32>
    %c10_i32 = arith.constant 10 : i32
    %25 = vector.broadcast %c10_i32 : i32 to vector<16x32xi32>
    %26 = arith.cmpi slt, %22, %25 : vector<16x32xi32>
    %27 = arith.andi %24, %26 : vector<16x32xi1>
    %c1_i32_8 = arith.constant 1 : i32
    %28 = vector.broadcast %c1_i32_8 : i32 to vector<16x32xi32>
    %29 = arith.cmpi sge, %22, %28 : vector<16x32xi32>
    %c9_i32 = arith.constant 9 : i32
    %30 = vector.broadcast %c9_i32 : i32 to vector<16x32xi32>
    %31 = arith.cmpi slt, %22, %30 : vector<16x32xi32>
    %32 = arith.andi %29, %31 : vector<16x32xi1>
    %c-1_i32 = arith.constant -1 : i32
    %33 = vector.broadcast %c-1_i32 : i32 to vector<16x32xi32>
    %34 = arith.cmpi sge, %22, %33 : vector<16x32xi32>
    %c7_i32 = arith.constant 7 : i32
    %35 = vector.broadcast %c7_i32 : i32 to vector<16x32xi32>
    %36 = arith.cmpi slt, %22, %35 : vector<16x32xi32>
    %37 = arith.andi %34, %36 : vector<16x32xi1>
    %c-2_i32 = arith.constant -2 : i32
    %38 = vector.broadcast %c-2_i32 : i32 to vector<16x32xi32>
    %39 = arith.cmpi sge, %22, %38 : vector<16x32xi32>
    %c6_i32 = arith.constant 6 : i32
    %40 = vector.broadcast %c6_i32 : i32 to vector<16x32xi32>
    %41 = arith.cmpi slt, %22, %40 : vector<16x32xi32>
    %42 = arith.andi %39, %41 : vector<16x32xi1>
    %cst_9 = arith.constant 0.000000e+00 : f32
    %43 = vector.broadcast %cst_9 : f32 to vector<16x32xf32>
    %44 = arith.maximumf %5, %43 : vector<16x32xf32>
    %c0_10 = arith.constant 0 : index
    %c0_11 = arith.constant 0 : index
    %c0_12 = arith.constant 0 : index
    %45 = vector.load %arg3[%c0_10, %c0_11, %c0_12] : memref<10x32x160xf32, #tpu.memory_space<vmem>>, vector<1x32x160xf32>
    %46 = vector.shape_cast %45 : vector<1x32x160xf32> to vector<32x160xf32>
    %cst_13 = arith.constant dense<0.000000e+00> : vector<16x160xf32>
    %47 = tpu.matmul %44, %46, %cst_13 {dimension_numbers = #tpu.dot_dimension_numbers<[1], [0], [0], [1], [0, 0, 1, 1], [], []>} : vector<16x32xf32>, vector<32x160xf32>, vector<16x160xf32> -> vector<16x160xf32>
    %48 = vector.extract_strided_slice %47 {offsets = [0, 0], sizes = [16, 32], strides = [1, 1]} : vector<16x160xf32> to vector<16x32xf32>
    %c2_i32_14 = arith.constant 2 : i32
    %49 = tpu.dynamic_rotate %48 by %c2_i32_14 dim 0 : vector<16x32xf32>, i32 -> vector<16x32xf32>
    %cst_15 = arith.constant 0.000000e+00 : f32
    %50 = vector.broadcast %cst_15 : f32 to vector<16x32xf32>
    %51 = arith.select %27, %49, %50 : vector<16x32xi1>, vector<16x32xf32>
    %52 = vector.extract_strided_slice %47 {offsets = [0, 32], sizes = [16, 32], strides = [1, 1]} : vector<16x160xf32> to vector<16x32xf32>
    %c1_i32_16 = arith.constant 1 : i32
    %53 = tpu.dynamic_rotate %52 by %c1_i32_16 dim 0 : vector<16x32xf32>, i32 -> vector<16x32xf32>
    %cst_17 = arith.constant 0.000000e+00 : f32
    %54 = vector.broadcast %cst_17 : f32 to vector<16x32xf32>
    %55 = arith.select %32, %53, %54 : vector<16x32xi1>, vector<16x32xf32>
    %56 = arith.addf %51, %55 : vector<16x32xf32>
    %57 = vector.extract_strided_slice %47 {offsets = [0, 64], sizes = [16, 32], strides = [1, 1]} : vector<16x160xf32> to vector<16x32xf32>
    %58 = arith.addf %56, %57 : vector<16x32xf32>
    %59 = vector.extract_strided_slice %47 {offsets = [0, 96], sizes = [16, 32], strides = [1, 1]} : vector<16x160xf32> to vector<16x32xf32>
    %c15_i32 = arith.constant 15 : i32
    %60 = tpu.dynamic_rotate %59 by %c15_i32 dim 0 : vector<16x32xf32>, i32 -> vector<16x32xf32>
    %cst_18 = arith.constant 0.000000e+00 : f32
    %61 = vector.broadcast %cst_18 : f32 to vector<16x32xf32>
    %62 = arith.select %37, %60, %61 : vector<16x32xi1>, vector<16x32xf32>
    %63 = arith.addf %58, %62 : vector<16x32xf32>
    %64 = vector.extract_strided_slice %47 {offsets = [0, 128], sizes = [16, 32], strides = [1, 1]} : vector<16x160xf32> to vector<16x32xf32>
    %c14_i32 = arith.constant 14 : i32
    %65 = tpu.dynamic_rotate %64 by %c14_i32 dim 0 : vector<16x32xf32>, i32 -> vector<16x32xf32>
    %cst_19 = arith.constant 0.000000e+00 : f32
    %66 = vector.broadcast %cst_19 : f32 to vector<16x32xf32>
    %67 = arith.select %42, %65, %66 : vector<16x32xi1>, vector<16x32xf32>
    %68 = arith.addf %63, %67 : vector<16x32xf32>
    %c0_20 = arith.constant 0 : index
    %c0_21 = arith.constant 0 : index
    %c0_22 = arith.constant 0 : index
    %69 = vector.load %arg4[%c0_20, %c0_21, %c0_22] : memref<10x1x32xf32, #tpu.memory_space<vmem>>, vector<1x1x32xf32>
    %70 = vector.shape_cast %69 : vector<1x1x32xf32> to vector<1x32xf32>
    %71 = vector.broadcast %70 : vector<1x32xf32> to vector<16x32xf32>
    %72 = arith.addf %68, %71 : vector<16x32xf32>
    %cst_23 = arith.constant 0.000000e+00 : f32
    %73 = vector.broadcast %cst_23 : f32 to vector<16x32xf32>
    %74 = arith.maximumf %72, %73 : vector<16x32xf32>
    %c1 = arith.constant 1 : index
    %c0_24 = arith.constant 0 : index
    %c0_25 = arith.constant 0 : index
    %75 = vector.load %arg3[%c1, %c0_24, %c0_25] : memref<10x32x160xf32, #tpu.memory_space<vmem>>, vector<1x32x160xf32>
    %76 = vector.shape_cast %75 : vector<1x32x160xf32> to vector<32x160xf32>
    %cst_26 = arith.constant dense<0.000000e+00> : vector<16x160xf32>
    %77 = tpu.matmul %74, %76, %cst_26 {dimension_numbers = #tpu.dot_dimension_numbers<[1], [0], [0], [1], [0, 0, 1, 1], [], []>} : vector<16x32xf32>, vector<32x160xf32>, vector<16x160xf32> -> vector<16x160xf32>
    %78 = vector.extract_strided_slice %77 {offsets = [0, 0], sizes = [16, 32], strides = [1, 1]} : vector<16x160xf32> to vector<16x32xf32>
    %c2_i32_27 = arith.constant 2 : i32
    %79 = tpu.dynamic_rotate %78 by %c2_i32_27 dim 0 : vector<16x32xf32>, i32 -> vector<16x32xf32>
    %cst_28 = arith.constant 0.000000e+00 : f32
    %80 = vector.broadcast %cst_28 : f32 to vector<16x32xf32>
    %81 = arith.select %27, %79, %80 : vector<16x32xi1>, vector<16x32xf32>
    %82 = vector.extract_strided_slice %77 {offsets = [0, 32], sizes = [16, 32], strides = [1, 1]} : vector<16x160xf32> to vector<16x32xf32>
    %c1_i32_29 = arith.constant 1 : i32
    %83 = tpu.dynamic_rotate %82 by %c1_i32_29 dim 0 : vector<16x32xf32>, i32 -> vector<16x32xf32>
    %cst_30 = arith.constant 0.000000e+00 : f32
    %84 = vector.broadcast %cst_30 : f32 to vector<16x32xf32>
    %85 = arith.select %32, %83, %84 : vector<16x32xi1>, vector<16x32xf32>
    %86 = arith.addf %81, %85 : vector<16x32xf32>
    %87 = vector.extract_strided_slice %77 {offsets = [0, 64], sizes = [16, 32], strides = [1, 1]} : vector<16x160xf32> to vector<16x32xf32>
    %88 = arith.addf %86, %87 : vector<16x32xf32>
    %89 = vector.extract_strided_slice %77 {offsets = [0, 96], sizes = [16, 32], strides = [1, 1]} : vector<16x160xf32> to vector<16x32xf32>
    %c15_i32_31 = arith.constant 15 : i32
    %90 = tpu.dynamic_rotate %89 by %c15_i32_31 dim 0 : vector<16x32xf32>, i32 -> vector<16x32xf32>
    %cst_32 = arith.constant 0.000000e+00 : f32
    %91 = vector.broadcast %cst_32 : f32 to vector<16x32xf32>
    %92 = arith.select %37, %90, %91 : vector<16x32xi1>, vector<16x32xf32>
    %93 = arith.addf %88, %92 : vector<16x32xf32>
    %94 = vector.extract_strided_slice %77 {offsets = [0, 128], sizes = [16, 32], strides = [1, 1]} : vector<16x160xf32> to vector<16x32xf32>
    %c14_i32_33 = arith.constant 14 : i32
    %95 = tpu.dynamic_rotate %94 by %c14_i32_33 dim 0 : vector<16x32xf32>, i32 -> vector<16x32xf32>
    %cst_34 = arith.constant 0.000000e+00 : f32
    %96 = vector.broadcast %cst_34 : f32 to vector<16x32xf32>
    %97 = arith.select %42, %95, %96 : vector<16x32xi1>, vector<16x32xf32>
    %98 = arith.addf %93, %97 : vector<16x32xf32>
    %c1_35 = arith.constant 1 : index
    %c0_36 = arith.constant 0 : index
    %c0_37 = arith.constant 0 : index
    %99 = vector.load %arg4[%c1_35, %c0_36, %c0_37] : memref<10x1x32xf32, #tpu.memory_space<vmem>>, vector<1x1x32xf32>
    %100 = vector.shape_cast %99 : vector<1x1x32xf32> to vector<1x32xf32>
    %101 = vector.broadcast %100 : vector<1x32xf32> to vector<16x32xf32>
    %102 = arith.addf %98, %101 : vector<16x32xf32>
    %cst_38 = arith.constant 3.000000e-01 : f32
    %103 = vector.broadcast %cst_38 : f32 to vector<16x32xf32>
    %104 = arith.mulf %103, %102 : vector<16x32xf32>
    %105 = arith.addf %5, %104 : vector<16x32xf32>
    %cst_39 = arith.constant 0.000000e+00 : f32
    %106 = vector.broadcast %cst_39 : f32 to vector<16x32xf32>
    %107 = arith.maximumf %105, %106 : vector<16x32xf32>
    %c2 = arith.constant 2 : index
    %c0_40 = arith.constant 0 : index
    %c0_41 = arith.constant 0 : index
    %108 = vector.load %arg3[%c2, %c0_40, %c0_41] : memref<10x32x160xf32, #tpu.memory_space<vmem>>, vector<1x32x160xf32>
    %109 = vector.shape_cast %108 : vector<1x32x160xf32> to vector<32x160xf32>
    %cst_42 = arith.constant dense<0.000000e+00> : vector<16x160xf32>
    %110 = tpu.matmul %107, %109, %cst_42 {dimension_numbers = #tpu.dot_dimension_numbers<[1], [0], [0], [1], [0, 0, 1, 1], [], []>} : vector<16x32xf32>, vector<32x160xf32>, vector<16x160xf32> -> vector<16x160xf32>
    %111 = vector.extract_strided_slice %110 {offsets = [0, 0], sizes = [16, 32], strides = [1, 1]} : vector<16x160xf32> to vector<16x32xf32>
    %c2_i32_43 = arith.constant 2 : i32
    %112 = tpu.dynamic_rotate %111 by %c2_i32_43 dim 0 : vector<16x32xf32>, i32 -> vector<16x32xf32>
    %cst_44 = arith.constant 0.000000e+00 : f32
    %113 = vector.broadcast %cst_44 : f32 to vector<16x32xf32>
    %114 = arith.select %27, %112, %113 : vector<16x32xi1>, vector<16x32xf32>
    %115 = vector.extract_strided_slice %110 {offsets = [0, 32], sizes = [16, 32], strides = [1, 1]} : vector<16x160xf32> to vector<16x32xf32>
    %c1_i32_45 = arith.constant 1 : i32
    %116 = tpu.dynamic_rotate %115 by %c1_i32_45 dim 0 : vector<16x32xf32>, i32 -> vector<16x32xf32>
    %cst_46 = arith.constant 0.000000e+00 : f32
    %117 = vector.broadcast %cst_46 : f32 to vector<16x32xf32>
    %118 = arith.select %32, %116, %117 : vector<16x32xi1>, vector<16x32xf32>
    %119 = arith.addf %114, %118 : vector<16x32xf32>
    %120 = vector.extract_strided_slice %110 {offsets = [0, 64], sizes = [16, 32], strides = [1, 1]} : vector<16x160xf32> to vector<16x32xf32>
    %121 = arith.addf %119, %120 : vector<16x32xf32>
    %122 = vector.extract_strided_slice %110 {offsets = [0, 96], sizes = [16, 32], strides = [1, 1]} : vector<16x160xf32> to vector<16x32xf32>
    %c15_i32_47 = arith.constant 15 : i32
    %123 = tpu.dynamic_rotate %122 by %c15_i32_47 dim 0 : vector<16x32xf32>, i32 -> vector<16x32xf32>
    %cst_48 = arith.constant 0.000000e+00 : f32
    %124 = vector.broadcast %cst_48 : f32 to vector<16x32xf32>
    %125 = arith.select %37, %123, %124 : vector<16x32xi1>, vector<16x32xf32>
    %126 = arith.addf %121, %125 : vector<16x32xf32>
    %127 = vector.extract_strided_slice %110 {offsets = [0, 128], sizes = [16, 32], strides = [1, 1]} : vector<16x160xf32> to vector<16x32xf32>
    %c14_i32_49 = arith.constant 14 : i32
    %128 = tpu.dynamic_rotate %127 by %c14_i32_49 dim 0 : vector<16x32xf32>, i32 -> vector<16x32xf32>
    %cst_50 = arith.constant 0.000000e+00 : f32
    %129 = vector.broadcast %cst_50 : f32 to vector<16x32xf32>
    %130 = arith.select %42, %128, %129 : vector<16x32xi1>, vector<16x32xf32>
    %131 = arith.addf %126, %130 : vector<16x32xf32>
    %c2_51 = arith.constant 2 : index
    %c0_52 = arith.constant 0 : index
    %c0_53 = arith.constant 0 : index
    %132 = vector.load %arg4[%c2_51, %c0_52, %c0_53] : memref<10x1x32xf32, #tpu.memory_space<vmem>>, vector<1x1x32xf32>
    %133 = vector.shape_cast %132 : vector<1x1x32xf32> to vector<1x32xf32>
    %134 = vector.broadcast %133 : vector<1x32xf32> to vector<16x32xf32>
    %135 = arith.addf %131, %134 : vector<16x32xf32>
    %cst_54 = arith.constant 0.000000e+00 : f32
    %136 = vector.broadcast %cst_54 : f32 to vector<16x32xf32>
    %137 = arith.maximumf %135, %136 : vector<16x32xf32>
    %c3 = arith.constant 3 : index
    %c0_55 = arith.constant 0 : index
    %c0_56 = arith.constant 0 : index
    %138 = vector.load %arg3[%c3, %c0_55, %c0_56] : memref<10x32x160xf32, #tpu.memory_space<vmem>>, vector<1x32x160xf32>
    %139 = vector.shape_cast %138 : vector<1x32x160xf32> to vector<32x160xf32>
    %cst_57 = arith.constant dense<0.000000e+00> : vector<16x160xf32>
    %140 = tpu.matmul %137, %139, %cst_57 {dimension_numbers = #tpu.dot_dimension_numbers<[1], [0], [0], [1], [0, 0, 1, 1], [], []>} : vector<16x32xf32>, vector<32x160xf32>, vector<16x160xf32> -> vector<16x160xf32>
    %141 = vector.extract_strided_slice %140 {offsets = [0, 0], sizes = [16, 32], strides = [1, 1]} : vector<16x160xf32> to vector<16x32xf32>
    %c2_i32_58 = arith.constant 2 : i32
    %142 = tpu.dynamic_rotate %141 by %c2_i32_58 dim 0 : vector<16x32xf32>, i32 -> vector<16x32xf32>
    %cst_59 = arith.constant 0.000000e+00 : f32
    %143 = vector.broadcast %cst_59 : f32 to vector<16x32xf32>
    %144 = arith.select %27, %142, %143 : vector<16x32xi1>, vector<16x32xf32>
    %145 = vector.extract_strided_slice %140 {offsets = [0, 32], sizes = [16, 32], strides = [1, 1]} : vector<16x160xf32> to vector<16x32xf32>
    %c1_i32_60 = arith.constant 1 : i32
    %146 = tpu.dynamic_rotate %145 by %c1_i32_60 dim 0 : vector<16x32xf32>, i32 -> vector<16x32xf32>
    %cst_61 = arith.constant 0.000000e+00 : f32
    %147 = vector.broadcast %cst_61 : f32 to vector<16x32xf32>
    %148 = arith.select %32, %146, %147 : vector<16x32xi1>, vector<16x32xf32>
    %149 = arith.addf %144, %148 : vector<16x32xf32>
    %150 = vector.extract_strided_slice %140 {offsets = [0, 64], sizes = [16, 32], strides = [1, 1]} : vector<16x160xf32> to vector<16x32xf32>
    %151 = arith.addf %149, %150 : vector<16x32xf32>
    %152 = vector.extract_strided_slice %140 {offsets = [0, 96], sizes = [16, 32], strides = [1, 1]} : vector<16x160xf32> to vector<16x32xf32>
    %c15_i32_62 = arith.constant 15 : i32
    %153 = tpu.dynamic_rotate %152 by %c15_i32_62 dim 0 : vector<16x32xf32>, i32 -> vector<16x32xf32>
    %cst_63 = arith.constant 0.000000e+00 : f32
    %154 = vector.broadcast %cst_63 : f32 to vector<16x32xf32>
    %155 = arith.select %37, %153, %154 : vector<16x32xi1>, vector<16x32xf32>
    %156 = arith.addf %151, %155 : vector<16x32xf32>
    %157 = vector.extract_strided_slice %140 {offsets = [0, 128], sizes = [16, 32], strides = [1, 1]} : vector<16x160xf32> to vector<16x32xf32>
    %c14_i32_64 = arith.constant 14 : i32
    %158 = tpu.dynamic_rotate %157 by %c14_i32_64 dim 0 : vector<16x32xf32>, i32 -> vector<16x32xf32>
    %cst_65 = arith.constant 0.000000e+00 : f32
    %159 = vector.broadcast %cst_65 : f32 to vector<16x32xf32>
    %160 = arith.select %42, %158, %159 : vector<16x32xi1>, vector<16x32xf32>
    %161 = arith.addf %156, %160 : vector<16x32xf32>
    %c3_66 = arith.constant 3 : index
    %c0_67 = arith.constant 0 : index
    %c0_68 = arith.constant 0 : index
    %162 = vector.load %arg4[%c3_66, %c0_67, %c0_68] : memref<10x1x32xf32, #tpu.memory_space<vmem>>, vector<1x1x32xf32>
    %163 = vector.shape_cast %162 : vector<1x1x32xf32> to vector<1x32xf32>
    %164 = vector.broadcast %163 : vector<1x32xf32> to vector<16x32xf32>
    %165 = arith.addf %161, %164 : vector<16x32xf32>
    %cst_69 = arith.constant 3.000000e-01 : f32
    %166 = vector.broadcast %cst_69 : f32 to vector<16x32xf32>
    %167 = arith.mulf %166, %165 : vector<16x32xf32>
    %168 = arith.addf %105, %167 : vector<16x32xf32>
    %cst_70 = arith.constant 0.000000e+00 : f32
    %169 = vector.broadcast %cst_70 : f32 to vector<16x32xf32>
    %170 = arith.maximumf %168, %169 : vector<16x32xf32>
    %c4 = arith.constant 4 : index
    %c0_71 = arith.constant 0 : index
    %c0_72 = arith.constant 0 : index
    %171 = vector.load %arg3[%c4, %c0_71, %c0_72] : memref<10x32x160xf32, #tpu.memory_space<vmem>>, vector<1x32x160xf32>
    %172 = vector.shape_cast %171 : vector<1x32x160xf32> to vector<32x160xf32>
    %cst_73 = arith.constant dense<0.000000e+00> : vector<16x160xf32>
    %173 = tpu.matmul %170, %172, %cst_73 {dimension_numbers = #tpu.dot_dimension_numbers<[1], [0], [0], [1], [0, 0, 1, 1], [], []>} : vector<16x32xf32>, vector<32x160xf32>, vector<16x160xf32> -> vector<16x160xf32>
    %174 = vector.extract_strided_slice %173 {offsets = [0, 0], sizes = [16, 32], strides = [1, 1]} : vector<16x160xf32> to vector<16x32xf32>
    %c2_i32_74 = arith.constant 2 : i32
    %175 = tpu.dynamic_rotate %174 by %c2_i32_74 dim 0 : vector<16x32xf32>, i32 -> vector<16x32xf32>
    %cst_75 = arith.constant 0.000000e+00 : f32
    %176 = vector.broadcast %cst_75 : f32 to vector<16x32xf32>
    %177 = arith.select %27, %175, %176 : vector<16x32xi1>, vector<16x32xf32>
    %178 = vector.extract_strided_slice %173 {offsets = [0, 32], sizes = [16, 32], strides = [1, 1]} : vector<16x160xf32> to vector<16x32xf32>
    %c1_i32_76 = arith.constant 1 : i32
    %179 = tpu.dynamic_rotate %178 by %c1_i32_76 dim 0 : vector<16x32xf32>, i32 -> vector<16x32xf32>
    %cst_77 = arith.constant 0.000000e+00 : f32
    %180 = vector.broadcast %cst_77 : f32 to vector<16x32xf32>
    %181 = arith.select %32, %179, %180 : vector<16x32xi1>, vector<16x32xf32>
    %182 = arith.addf %177, %181 : vector<16x32xf32>
    %183 = vector.extract_strided_slice %173 {offsets = [0, 64], sizes = [16, 32], strides = [1, 1]} : vector<16x160xf32> to vector<16x32xf32>
    %184 = arith.addf %182, %183 : vector<16x32xf32>
    %185 = vector.extract_strided_slice %173 {offsets = [0, 96], sizes = [16, 32], strides = [1, 1]} : vector<16x160xf32> to vector<16x32xf32>
    %c15_i32_78 = arith.constant 15 : i32
    %186 = tpu.dynamic_rotate %185 by %c15_i32_78 dim 0 : vector<16x32xf32>, i32 -> vector<16x32xf32>
    %cst_79 = arith.constant 0.000000e+00 : f32
    %187 = vector.broadcast %cst_79 : f32 to vector<16x32xf32>
    %188 = arith.select %37, %186, %187 : vector<16x32xi1>, vector<16x32xf32>
    %189 = arith.addf %184, %188 : vector<16x32xf32>
    %190 = vector.extract_strided_slice %173 {offsets = [0, 128], sizes = [16, 32], strides = [1, 1]} : vector<16x160xf32> to vector<16x32xf32>
    %c14_i32_80 = arith.constant 14 : i32
    %191 = tpu.dynamic_rotate %190 by %c14_i32_80 dim 0 : vector<16x32xf32>, i32 -> vector<16x32xf32>
    %cst_81 = arith.constant 0.000000e+00 : f32
    %192 = vector.broadcast %cst_81 : f32 to vector<16x32xf32>
    %193 = arith.select %42, %191, %192 : vector<16x32xi1>, vector<16x32xf32>
    %194 = arith.addf %189, %193 : vector<16x32xf32>
    %c4_82 = arith.constant 4 : index
    %c0_83 = arith.constant 0 : index
    %c0_84 = arith.constant 0 : index
    %195 = vector.load %arg4[%c4_82, %c0_83, %c0_84] : memref<10x1x32xf32, #tpu.memory_space<vmem>>, vector<1x1x32xf32>
    %196 = vector.shape_cast %195 : vector<1x1x32xf32> to vector<1x32xf32>
    %197 = vector.broadcast %196 : vector<1x32xf32> to vector<16x32xf32>
    %198 = arith.addf %194, %197 : vector<16x32xf32>
    %cst_85 = arith.constant 0.000000e+00 : f32
    %199 = vector.broadcast %cst_85 : f32 to vector<16x32xf32>
    %200 = arith.maximumf %198, %199 : vector<16x32xf32>
    %c5 = arith.constant 5 : index
    %c0_86 = arith.constant 0 : index
    %c0_87 = arith.constant 0 : index
    %201 = vector.load %arg3[%c5, %c0_86, %c0_87] : memref<10x32x160xf32, #tpu.memory_space<vmem>>, vector<1x32x160xf32>
    %202 = vector.shape_cast %201 : vector<1x32x160xf32> to vector<32x160xf32>
    %cst_88 = arith.constant dense<0.000000e+00> : vector<16x160xf32>
    %203 = tpu.matmul %200, %202, %cst_88 {dimension_numbers = #tpu.dot_dimension_numbers<[1], [0], [0], [1], [0, 0, 1, 1], [], []>} : vector<16x32xf32>, vector<32x160xf32>, vector<16x160xf32> -> vector<16x160xf32>
    %204 = vector.extract_strided_slice %203 {offsets = [0, 0], sizes = [16, 32], strides = [1, 1]} : vector<16x160xf32> to vector<16x32xf32>
    %c2_i32_89 = arith.constant 2 : i32
    %205 = tpu.dynamic_rotate %204 by %c2_i32_89 dim 0 : vector<16x32xf32>, i32 -> vector<16x32xf32>
    %cst_90 = arith.constant 0.000000e+00 : f32
    %206 = vector.broadcast %cst_90 : f32 to vector<16x32xf32>
    %207 = arith.select %27, %205, %206 : vector<16x32xi1>, vector<16x32xf32>
    %208 = vector.extract_strided_slice %203 {offsets = [0, 32], sizes = [16, 32], strides = [1, 1]} : vector<16x160xf32> to vector<16x32xf32>
    %c1_i32_91 = arith.constant 1 : i32
    %209 = tpu.dynamic_rotate %208 by %c1_i32_91 dim 0 : vector<16x32xf32>, i32 -> vector<16x32xf32>
    %cst_92 = arith.constant 0.000000e+00 : f32
    %210 = vector.broadcast %cst_92 : f32 to vector<16x32xf32>
    %211 = arith.select %32, %209, %210 : vector<16x32xi1>, vector<16x32xf32>
    %212 = arith.addf %207, %211 : vector<16x32xf32>
    %213 = vector.extract_strided_slice %203 {offsets = [0, 64], sizes = [16, 32], strides = [1, 1]} : vector<16x160xf32> to vector<16x32xf32>
    %214 = arith.addf %212, %213 : vector<16x32xf32>
    %215 = vector.extract_strided_slice %203 {offsets = [0, 96], sizes = [16, 32], strides = [1, 1]} : vector<16x160xf32> to vector<16x32xf32>
    %c15_i32_93 = arith.constant 15 : i32
    %216 = tpu.dynamic_rotate %215 by %c15_i32_93 dim 0 : vector<16x32xf32>, i32 -> vector<16x32xf32>
    %cst_94 = arith.constant 0.000000e+00 : f32
    %217 = vector.broadcast %cst_94 : f32 to vector<16x32xf32>
    %218 = arith.select %37, %216, %217 : vector<16x32xi1>, vector<16x32xf32>
    %219 = arith.addf %214, %218 : vector<16x32xf32>
    %220 = vector.extract_strided_slice %203 {offsets = [0, 128], sizes = [16, 32], strides = [1, 1]} : vector<16x160xf32> to vector<16x32xf32>
    %c14_i32_95 = arith.constant 14 : i32
    %221 = tpu.dynamic_rotate %220 by %c14_i32_95 dim 0 : vector<16x32xf32>, i32 -> vector<16x32xf32>
    %cst_96 = arith.constant 0.000000e+00 : f32
    %222 = vector.broadcast %cst_96 : f32 to vector<16x32xf32>
    %223 = arith.select %42, %221, %222 : vector<16x32xi1>, vector<16x32xf32>
    %224 = arith.addf %219, %223 : vector<16x32xf32>
    %c5_97 = arith.constant 5 : index
    %c0_98 = arith.constant 0 : index
    %c0_99 = arith.constant 0 : index
    %225 = vector.load %arg4[%c5_97, %c0_98, %c0_99] : memref<10x1x32xf32, #tpu.memory_space<vmem>>, vector<1x1x32xf32>
    %226 = vector.shape_cast %225 : vector<1x1x32xf32> to vector<1x32xf32>
    %227 = vector.broadcast %226 : vector<1x32xf32> to vector<16x32xf32>
    %228 = arith.addf %224, %227 : vector<16x32xf32>
    %cst_100 = arith.constant 3.000000e-01 : f32
    %229 = vector.broadcast %cst_100 : f32 to vector<16x32xf32>
    %230 = arith.mulf %229, %228 : vector<16x32xf32>
    %231 = arith.addf %168, %230 : vector<16x32xf32>
    %cst_101 = arith.constant 0.000000e+00 : f32
    %232 = vector.broadcast %cst_101 : f32 to vector<16x32xf32>
    %233 = arith.maximumf %231, %232 : vector<16x32xf32>
    %c6 = arith.constant 6 : index
    %c0_102 = arith.constant 0 : index
    %c0_103 = arith.constant 0 : index
    %234 = vector.load %arg3[%c6, %c0_102, %c0_103] : memref<10x32x160xf32, #tpu.memory_space<vmem>>, vector<1x32x160xf32>
    %235 = vector.shape_cast %234 : vector<1x32x160xf32> to vector<32x160xf32>
    %cst_104 = arith.constant dense<0.000000e+00> : vector<16x160xf32>
    %236 = tpu.matmul %233, %235, %cst_104 {dimension_numbers = #tpu.dot_dimension_numbers<[1], [0], [0], [1], [0, 0, 1, 1], [], []>} : vector<16x32xf32>, vector<32x160xf32>, vector<16x160xf32> -> vector<16x160xf32>
    %237 = vector.extract_strided_slice %236 {offsets = [0, 0], sizes = [16, 32], strides = [1, 1]} : vector<16x160xf32> to vector<16x32xf32>
    %c2_i32_105 = arith.constant 2 : i32
    %238 = tpu.dynamic_rotate %237 by %c2_i32_105 dim 0 : vector<16x32xf32>, i32 -> vector<16x32xf32>
    %cst_106 = arith.constant 0.000000e+00 : f32
    %239 = vector.broadcast %cst_106 : f32 to vector<16x32xf32>
    %240 = arith.select %27, %238, %239 : vector<16x32xi1>, vector<16x32xf32>
    %241 = vector.extract_strided_slice %236 {offsets = [0, 32], sizes = [16, 32], strides = [1, 1]} : vector<16x160xf32> to vector<16x32xf32>
    %c1_i32_107 = arith.constant 1 : i32
    %242 = tpu.dynamic_rotate %241 by %c1_i32_107 dim 0 : vector<16x32xf32>, i32 -> vector<16x32xf32>
    %cst_108 = arith.constant 0.000000e+00 : f32
    %243 = vector.broadcast %cst_108 : f32 to vector<16x32xf32>
    %244 = arith.select %32, %242, %243 : vector<16x32xi1>, vector<16x32xf32>
    %245 = arith.addf %240, %244 : vector<16x32xf32>
    %246 = vector.extract_strided_slice %236 {offsets = [0, 64], sizes = [16, 32], strides = [1, 1]} : vector<16x160xf32> to vector<16x32xf32>
    %247 = arith.addf %245, %246 : vector<16x32xf32>
    %248 = vector.extract_strided_slice %236 {offsets = [0, 96], sizes = [16, 32], strides = [1, 1]} : vector<16x160xf32> to vector<16x32xf32>
    %c15_i32_109 = arith.constant 15 : i32
    %249 = tpu.dynamic_rotate %248 by %c15_i32_109 dim 0 : vector<16x32xf32>, i32 -> vector<16x32xf32>
    %cst_110 = arith.constant 0.000000e+00 : f32
    %250 = vector.broadcast %cst_110 : f32 to vector<16x32xf32>
    %251 = arith.select %37, %249, %250 : vector<16x32xi1>, vector<16x32xf32>
    %252 = arith.addf %247, %251 : vector<16x32xf32>
    %253 = vector.extract_strided_slice %236 {offsets = [0, 128], sizes = [16, 32], strides = [1, 1]} : vector<16x160xf32> to vector<16x32xf32>
    %c14_i32_111 = arith.constant 14 : i32
    %254 = tpu.dynamic_rotate %253 by %c14_i32_111 dim 0 : vector<16x32xf32>, i32 -> vector<16x32xf32>
    %cst_112 = arith.constant 0.000000e+00 : f32
    %255 = vector.broadcast %cst_112 : f32 to vector<16x32xf32>
    %256 = arith.select %42, %254, %255 : vector<16x32xi1>, vector<16x32xf32>
    %257 = arith.addf %252, %256 : vector<16x32xf32>
    %c6_113 = arith.constant 6 : index
    %c0_114 = arith.constant 0 : index
    %c0_115 = arith.constant 0 : index
    %258 = vector.load %arg4[%c6_113, %c0_114, %c0_115] : memref<10x1x32xf32, #tpu.memory_space<vmem>>, vector<1x1x32xf32>
    %259 = vector.shape_cast %258 : vector<1x1x32xf32> to vector<1x32xf32>
    %260 = vector.broadcast %259 : vector<1x32xf32> to vector<16x32xf32>
    %261 = arith.addf %257, %260 : vector<16x32xf32>
    %cst_116 = arith.constant 0.000000e+00 : f32
    %262 = vector.broadcast %cst_116 : f32 to vector<16x32xf32>
    %263 = arith.maximumf %261, %262 : vector<16x32xf32>
    %c7 = arith.constant 7 : index
    %c0_117 = arith.constant 0 : index
    %c0_118 = arith.constant 0 : index
    %264 = vector.load %arg3[%c7, %c0_117, %c0_118] : memref<10x32x160xf32, #tpu.memory_space<vmem>>, vector<1x32x160xf32>
    %265 = vector.shape_cast %264 : vector<1x32x160xf32> to vector<32x160xf32>
    %cst_119 = arith.constant dense<0.000000e+00> : vector<16x160xf32>
    %266 = tpu.matmul %263, %265, %cst_119 {dimension_numbers = #tpu.dot_dimension_numbers<[1], [0], [0], [1], [0, 0, 1, 1], [], []>} : vector<16x32xf32>, vector<32x160xf32>, vector<16x160xf32> -> vector<16x160xf32>
    %267 = vector.extract_strided_slice %266 {offsets = [0, 0], sizes = [16, 32], strides = [1, 1]} : vector<16x160xf32> to vector<16x32xf32>
    %c2_i32_120 = arith.constant 2 : i32
    %268 = tpu.dynamic_rotate %267 by %c2_i32_120 dim 0 : vector<16x32xf32>, i32 -> vector<16x32xf32>
    %cst_121 = arith.constant 0.000000e+00 : f32
    %269 = vector.broadcast %cst_121 : f32 to vector<16x32xf32>
    %270 = arith.select %27, %268, %269 : vector<16x32xi1>, vector<16x32xf32>
    %271 = vector.extract_strided_slice %266 {offsets = [0, 32], sizes = [16, 32], strides = [1, 1]} : vector<16x160xf32> to vector<16x32xf32>
    %c1_i32_122 = arith.constant 1 : i32
    %272 = tpu.dynamic_rotate %271 by %c1_i32_122 dim 0 : vector<16x32xf32>, i32 -> vector<16x32xf32>
    %cst_123 = arith.constant 0.000000e+00 : f32
    %273 = vector.broadcast %cst_123 : f32 to vector<16x32xf32>
    %274 = arith.select %32, %272, %273 : vector<16x32xi1>, vector<16x32xf32>
    %275 = arith.addf %270, %274 : vector<16x32xf32>
    %276 = vector.extract_strided_slice %266 {offsets = [0, 64], sizes = [16, 32], strides = [1, 1]} : vector<16x160xf32> to vector<16x32xf32>
    %277 = arith.addf %275, %276 : vector<16x32xf32>
    %278 = vector.extract_strided_slice %266 {offsets = [0, 96], sizes = [16, 32], strides = [1, 1]} : vector<16x160xf32> to vector<16x32xf32>
    %c15_i32_124 = arith.constant 15 : i32
    %279 = tpu.dynamic_rotate %278 by %c15_i32_124 dim 0 : vector<16x32xf32>, i32 -> vector<16x32xf32>
    %cst_125 = arith.constant 0.000000e+00 : f32
    %280 = vector.broadcast %cst_125 : f32 to vector<16x32xf32>
    %281 = arith.select %37, %279, %280 : vector<16x32xi1>, vector<16x32xf32>
    %282 = arith.addf %277, %281 : vector<16x32xf32>
    %283 = vector.extract_strided_slice %266 {offsets = [0, 128], sizes = [16, 32], strides = [1, 1]} : vector<16x160xf32> to vector<16x32xf32>
    %c14_i32_126 = arith.constant 14 : i32
    %284 = tpu.dynamic_rotate %283 by %c14_i32_126 dim 0 : vector<16x32xf32>, i32 -> vector<16x32xf32>
    %cst_127 = arith.constant 0.000000e+00 : f32
    %285 = vector.broadcast %cst_127 : f32 to vector<16x32xf32>
    %286 = arith.select %42, %284, %285 : vector<16x32xi1>, vector<16x32xf32>
    %287 = arith.addf %282, %286 : vector<16x32xf32>
    %c7_128 = arith.constant 7 : index
    %c0_129 = arith.constant 0 : index
    %c0_130 = arith.constant 0 : index
    %288 = vector.load %arg4[%c7_128, %c0_129, %c0_130] : memref<10x1x32xf32, #tpu.memory_space<vmem>>, vector<1x1x32xf32>
    %289 = vector.shape_cast %288 : vector<1x1x32xf32> to vector<1x32xf32>
    %290 = vector.broadcast %289 : vector<1x32xf32> to vector<16x32xf32>
    %291 = arith.addf %287, %290 : vector<16x32xf32>
    %cst_131 = arith.constant 3.000000e-01 : f32
    %292 = vector.broadcast %cst_131 : f32 to vector<16x32xf32>
    %293 = arith.mulf %292, %291 : vector<16x32xf32>
    %294 = arith.addf %231, %293 : vector<16x32xf32>
    %cst_132 = arith.constant 0.000000e+00 : f32
    %295 = vector.broadcast %cst_132 : f32 to vector<16x32xf32>
    %296 = arith.maximumf %294, %295 : vector<16x32xf32>
    %c8 = arith.constant 8 : index
    %c0_133 = arith.constant 0 : index
    %c0_134 = arith.constant 0 : index
    %297 = vector.load %arg3[%c8, %c0_133, %c0_134] : memref<10x32x160xf32, #tpu.memory_space<vmem>>, vector<1x32x160xf32>
    %298 = vector.shape_cast %297 : vector<1x32x160xf32> to vector<32x160xf32>
    %cst_135 = arith.constant dense<0.000000e+00> : vector<16x160xf32>
    %299 = tpu.matmul %296, %298, %cst_135 {dimension_numbers = #tpu.dot_dimension_numbers<[1], [0], [0], [1], [0, 0, 1, 1], [], []>} : vector<16x32xf32>, vector<32x160xf32>, vector<16x160xf32> -> vector<16x160xf32>
    %300 = vector.extract_strided_slice %299 {offsets = [0, 0], sizes = [16, 32], strides = [1, 1]} : vector<16x160xf32> to vector<16x32xf32>
    %c2_i32_136 = arith.constant 2 : i32
    %301 = tpu.dynamic_rotate %300 by %c2_i32_136 dim 0 : vector<16x32xf32>, i32 -> vector<16x32xf32>
    %cst_137 = arith.constant 0.000000e+00 : f32
    %302 = vector.broadcast %cst_137 : f32 to vector<16x32xf32>
    %303 = arith.select %27, %301, %302 : vector<16x32xi1>, vector<16x32xf32>
    %304 = vector.extract_strided_slice %299 {offsets = [0, 32], sizes = [16, 32], strides = [1, 1]} : vector<16x160xf32> to vector<16x32xf32>
    %c1_i32_138 = arith.constant 1 : i32
    %305 = tpu.dynamic_rotate %304 by %c1_i32_138 dim 0 : vector<16x32xf32>, i32 -> vector<16x32xf32>
    %cst_139 = arith.constant 0.000000e+00 : f32
    %306 = vector.broadcast %cst_139 : f32 to vector<16x32xf32>
    %307 = arith.select %32, %305, %306 : vector<16x32xi1>, vector<16x32xf32>
    %308 = arith.addf %303, %307 : vector<16x32xf32>
    %309 = vector.extract_strided_slice %299 {offsets = [0, 64], sizes = [16, 32], strides = [1, 1]} : vector<16x160xf32> to vector<16x32xf32>
    %310 = arith.addf %308, %309 : vector<16x32xf32>
    %311 = vector.extract_strided_slice %299 {offsets = [0, 96], sizes = [16, 32], strides = [1, 1]} : vector<16x160xf32> to vector<16x32xf32>
    %c15_i32_140 = arith.constant 15 : i32
    %312 = tpu.dynamic_rotate %311 by %c15_i32_140 dim 0 : vector<16x32xf32>, i32 -> vector<16x32xf32>
    %cst_141 = arith.constant 0.000000e+00 : f32
    %313 = vector.broadcast %cst_141 : f32 to vector<16x32xf32>
    %314 = arith.select %37, %312, %313 : vector<16x32xi1>, vector<16x32xf32>
    %315 = arith.addf %310, %314 : vector<16x32xf32>
    %316 = vector.extract_strided_slice %299 {offsets = [0, 128], sizes = [16, 32], strides = [1, 1]} : vector<16x160xf32> to vector<16x32xf32>
    %c14_i32_142 = arith.constant 14 : i32
    %317 = tpu.dynamic_rotate %316 by %c14_i32_142 dim 0 : vector<16x32xf32>, i32 -> vector<16x32xf32>
    %cst_143 = arith.constant 0.000000e+00 : f32
    %318 = vector.broadcast %cst_143 : f32 to vector<16x32xf32>
    %319 = arith.select %42, %317, %318 : vector<16x32xi1>, vector<16x32xf32>
    %320 = arith.addf %315, %319 : vector<16x32xf32>
    %c8_144 = arith.constant 8 : index
    %c0_145 = arith.constant 0 : index
    %c0_146 = arith.constant 0 : index
    %321 = vector.load %arg4[%c8_144, %c0_145, %c0_146] : memref<10x1x32xf32, #tpu.memory_space<vmem>>, vector<1x1x32xf32>
    %322 = vector.shape_cast %321 : vector<1x1x32xf32> to vector<1x32xf32>
    %323 = vector.broadcast %322 : vector<1x32xf32> to vector<16x32xf32>
    %324 = arith.addf %320, %323 : vector<16x32xf32>
    %cst_147 = arith.constant 0.000000e+00 : f32
    %325 = vector.broadcast %cst_147 : f32 to vector<16x32xf32>
    %326 = arith.maximumf %324, %325 : vector<16x32xf32>
    %c9 = arith.constant 9 : index
    %c0_148 = arith.constant 0 : index
    %c0_149 = arith.constant 0 : index
    %327 = vector.load %arg3[%c9, %c0_148, %c0_149] : memref<10x32x160xf32, #tpu.memory_space<vmem>>, vector<1x32x160xf32>
    %328 = vector.shape_cast %327 : vector<1x32x160xf32> to vector<32x160xf32>
    %cst_150 = arith.constant dense<0.000000e+00> : vector<16x160xf32>
    %329 = tpu.matmul %326, %328, %cst_150 {dimension_numbers = #tpu.dot_dimension_numbers<[1], [0], [0], [1], [0, 0, 1, 1], [], []>} : vector<16x32xf32>, vector<32x160xf32>, vector<16x160xf32> -> vector<16x160xf32>
    %330 = vector.extract_strided_slice %329 {offsets = [0, 0], sizes = [16, 32], strides = [1, 1]} : vector<16x160xf32> to vector<16x32xf32>
    %c2_i32_151 = arith.constant 2 : i32
    %331 = tpu.dynamic_rotate %330 by %c2_i32_151 dim 0 : vector<16x32xf32>, i32 -> vector<16x32xf32>
    %cst_152 = arith.constant 0.000000e+00 : f32
    %332 = vector.broadcast %cst_152 : f32 to vector<16x32xf32>
    %333 = arith.select %27, %331, %332 : vector<16x32xi1>, vector<16x32xf32>
    %334 = vector.extract_strided_slice %329 {offsets = [0, 32], sizes = [16, 32], strides = [1, 1]} : vector<16x160xf32> to vector<16x32xf32>
    %c1_i32_153 = arith.constant 1 : i32
    %335 = tpu.dynamic_rotate %334 by %c1_i32_153 dim 0 : vector<16x32xf32>, i32 -> vector<16x32xf32>
    %cst_154 = arith.constant 0.000000e+00 : f32
    %336 = vector.broadcast %cst_154 : f32 to vector<16x32xf32>
    %337 = arith.select %32, %335, %336 : vector<16x32xi1>, vector<16x32xf32>
    %338 = arith.addf %333, %337 : vector<16x32xf32>
    %339 = vector.extract_strided_slice %329 {offsets = [0, 64], sizes = [16, 32], strides = [1, 1]} : vector<16x160xf32> to vector<16x32xf32>
    %340 = arith.addf %338, %339 : vector<16x32xf32>
    %341 = vector.extract_strided_slice %329 {offsets = [0, 96], sizes = [16, 32], strides = [1, 1]} : vector<16x160xf32> to vector<16x32xf32>
    %c15_i32_155 = arith.constant 15 : i32
    %342 = tpu.dynamic_rotate %341 by %c15_i32_155 dim 0 : vector<16x32xf32>, i32 -> vector<16x32xf32>
    %cst_156 = arith.constant 0.000000e+00 : f32
    %343 = vector.broadcast %cst_156 : f32 to vector<16x32xf32>
    %344 = arith.select %37, %342, %343 : vector<16x32xi1>, vector<16x32xf32>
    %345 = arith.addf %340, %344 : vector<16x32xf32>
    %346 = vector.extract_strided_slice %329 {offsets = [0, 128], sizes = [16, 32], strides = [1, 1]} : vector<16x160xf32> to vector<16x32xf32>
    %c14_i32_157 = arith.constant 14 : i32
    %347 = tpu.dynamic_rotate %346 by %c14_i32_157 dim 0 : vector<16x32xf32>, i32 -> vector<16x32xf32>
    %cst_158 = arith.constant 0.000000e+00 : f32
    %348 = vector.broadcast %cst_158 : f32 to vector<16x32xf32>
    %349 = arith.select %42, %347, %348 : vector<16x32xi1>, vector<16x32xf32>
    %350 = arith.addf %345, %349 : vector<16x32xf32>
    %c9_159 = arith.constant 9 : index
    %c0_160 = arith.constant 0 : index
    %c0_161 = arith.constant 0 : index
    %351 = vector.load %arg4[%c9_159, %c0_160, %c0_161] : memref<10x1x32xf32, #tpu.memory_space<vmem>>, vector<1x1x32xf32>
    %352 = vector.shape_cast %351 : vector<1x1x32xf32> to vector<1x32xf32>
    %353 = vector.broadcast %352 : vector<1x32xf32> to vector<16x32xf32>
    %354 = arith.addf %350, %353 : vector<16x32xf32>
    %cst_162 = arith.constant 3.000000e-01 : f32
    %355 = vector.broadcast %cst_162 : f32 to vector<16x32xf32>
    %356 = arith.mulf %355, %354 : vector<16x32xf32>
    %357 = arith.addf %294, %356 : vector<16x32xf32>
    %c0_163 = arith.constant 0 : index
    %c0_164 = arith.constant 0 : index
    %358 = vector.load %arg5[%c0_163, %c0_164] : memref<16x32xf32, #tpu.memory_space<vmem>>, vector<16x32xf32>
    %359 = arith.mulf %357, %358 : vector<16x32xf32>
    %c0_165 = arith.constant 0 : index
    %c0_166 = arith.constant 0 : index
    %360 = vector.load %arg6[%c0_165, %c0_166] : memref<2x16xf32, #tpu.memory_space<vmem>>, vector<2x16xf32>
    %cst_167 = arith.constant dense<0.000000e+00> : vector<2x32xf32>
    %361 = tpu.matmul %360, %359, %cst_167 {dimension_numbers = #tpu.dot_dimension_numbers<[1], [0], [0], [1], [0, 0, 1, 1], [], []>} : vector<2x16xf32>, vector<16x32xf32>, vector<2x32xf32> -> vector<2x32xf32>
    %cst_168 = arith.constant dense<0.000000e+00> : vector<2xf32>
    %362 = vector.multi_reduction <add>, %361, %cst_168 [1] : vector<2x32xf32> to vector<2xf32>
    %363 = vector.shape_cast %362 : vector<2xf32> to vector<2x1xf32>
    %c0_169 = arith.constant 0 : index
    %c0_170 = arith.constant 0 : index
    %364 = vector.load %arg7[%c0_169, %c0_170] : memref<1x1xf32, #tpu.memory_space<vmem>>, vector<1x1xf32>
    %365 = vector.broadcast %364 : vector<1x1xf32> to vector<2x1xf32>
    %366 = arith.addf %363, %365 : vector<2x1xf32>
    %c0_171 = arith.constant 0 : index
    %c0_172 = arith.constant 0 : index
    %367 = vector.load %arg8[%c0_171, %c0_172] : memref<2x1xf32, #tpu.memory_space<vmem>>, vector<2x1xf32>
    tpu.vector_store %arg8[%c0_171, %c0_172], %366 {strides = array<i32>} : memref<2x1xf32, #tpu.memory_space<vmem>>, vector<2x1xf32>,
    return
  }
}

</mosaic_0001>

<llo_original>
// kernel: tpu_custom_call.1
$region0: #{tpu_custom_call.1}
  #allocation0 [shape = 'u32[]', space=smem, size = 0x4, offset = 0x4, fixed_abs, tag = 'smem constant byte address 0x4 - core index']
  #allocation1 [shape = 'u32[144,128]{1,0:T(1,128)}', space=vmem, size = 0x12000, scoped, tag = 'internal scratch']
  #allocation2 [shape = 'f32[1,1]{1,0:T(1,128)S(1)}', space=vmem, size = 0x200, scoped, tag = 'scoped memory for tpu_custom_call.1']
  %s0 = inlined_call_operand.hbm [shape: f32[16,16], index: 0, kind: input, shape index: {}]
  %s1 = inlined_call_operand.hbm [shape: f32[16,32], index: 1, kind: input, shape index: {}]
  %s2 = inlined_call_operand.vmem [shape: f32[1,32], index: 2, kind: input, shape index: {}]
  %s3 = inlined_call_operand.hbm [shape: f32[10,32,160], index: 3, kind: input, shape index: {}]
  %s4 = inlined_call_operand.hbm [shape: f32[10,1,32], index: 4, kind: input, shape index: {}]
  %s5 = inlined_call_operand.vmem [shape: f32[16,32], index: 5, kind: input, shape index: {}]
  %s6 = inlined_call_operand.vmem [shape: f32[2,16], index: 6, kind: input, shape index: {}]
  %s7 = inlined_call_operand.<no memory space> [shape: f32[1,1], index: 7, kind: input, shape index: {}]
  %s8 = inlined_call_operand.vmem [shape: f32[2,1], index: 8, kind: output, shape index: {}]
  %s9 = sld [smem:[#allocation0]]
  $region58: #{tpu_custom_call.1} parent=0
    _
  %s11 = ssub.s32 1, %s9
  %s12 = scalar_select 0, %s11, %s9
  %v13 = vstv %s7
  %14 = vst [vmem:[#allocation2] sm:$0x1] %v13
  $region1: #{tpu_custom_call.1} parent=0
    #allocation3 [shape = 'u8[8192]{0}', space=vmem, size = 0x2000, scoped, tag = 'input window, operand 0, single buffered']
    #allocation4 [shape = 's32[1]{0}', space=sflag, size = 0x4, scoped, tag = 'scoped memory for tpu_custom_call.1']
    #allocation5 [shape = 'u8[8192]{0}', space=vmem, size = 0x2000, scoped, tag = 'input window, operand 1, single buffered']
    #allocation6 [shape = 's32[1]{0}', space=sflag, size = 0x4, scoped, tag = 'scoped memory for tpu_custom_call.1']
    #allocation7 [shape = 'u8[327680]{0}', space=vmem, size = 0x50000, scoped, tag = 'input window, operand 3, single buffered']
    #allocation8 [shape = 'u8[5120]{0}', space=vmem, size = 0x1400, scoped, tag = 'input window, operand 4, single buffered']
    #allocation9 [shape = 's32[1]{0}', space=sflag, size = 0x4, scoped, tag = 'scoped memory for tpu_custom_call.1']
    %15 = vsyncpa [#allocation4], 0
    %16 = vsyncpa [#allocation6], 0
    %17 = vsyncpa [#allocation9], 0
    // Predicated region
    $region2: #{tpu_custom_call.1} parent=1 // pred_check
      _
    $region3: #{tpu_custom_call.1} parent=1 // pred_check_branch
      %19 = sbr.rel (0) target = $region5
    $region4: #{tpu_custom_call.1} parent=1 // pred_region
      %s21 = ssub.s32 256, 256
      %22 = vsyncadd [#allocation4], %s21
      %s23 = sshll.u32 [#allocation3], 4
      %s24 = int_to_ptr.vmem [resolvable:$true] %s23
      %29 = dma.hbm_to_vmem [thread:$0]  %s0, 256, %s24, [#allocation4], 128, 128, 8
    $region5: #{tpu_custom_call.1} parent=1 // pred_fallthru
      _
    // Predicated region
    $region6: #{tpu_custom_call.1} parent=1 // pred_check
      _
    $region7: #{tpu_custom_call.1} parent=1 // pred_check_branch
      %31 = sbr.rel (0) target = $region9
    $region8: #{tpu_custom_call.1} parent=1 // pred_region
      %s33 = ssub.s32 256, 256
      %34 = vsyncadd [#allocation6], %s33
      %s35 = sshll.u32 [#allocation5], 4
      %s36 = int_to_ptr.vmem [resolvable:$true] %s35
      %41 = dma.hbm_to_vmem [thread:$0]  %s1, 256, %s36, [#allocation6], 128, 128, 8
    $region9: #{tpu_custom_call.1} parent=1 // pred_fallthru
      _
    // Predicated region
    $region10: #{tpu_custom_call.1} parent=1 // pred_check
      _
    $region11: #{tpu_custom_call.1} parent=1 // pred_check_branch
      %43 = sbr.rel (0) target = $region13
    $region12: #{tpu_custom_call.1} parent=1 // pred_region
      _
    $region13: #{tpu_custom_call.1} parent=1 // pred_fallthru
      _
    // Predicated region
    $region14: #{tpu_custom_call.1} parent=1 // pred_check
      _
    $region15: #{tpu_custom_call.1} parent=1 // pred_check_branch
      %45 = sbr.rel (0) target = $region17
    $region16: #{tpu_custom_call.1} parent=1 // pred_region
      %s47 = ssub.s32 10240, 10240
      %48 = vsyncadd [#allocation6], %s47
      %s49 = sshll.u32 [#allocation7], 4
      %s50 = int_to_ptr.vmem [resolvable:$true] %s49
      %55 = dma.hbm_to_vmem [thread:$0]  %s3, 10240, %s50, [#allocation6], 256, 256, 16
    $region17: #{tpu_custom_call.1} parent=1 // pred_fallthru
      _
    // Predicated region
    $region18: #{tpu_custom_call.1} parent=1 // pred_check
      _
    $region19: #{tpu_custom_call.1} parent=1 // pred_check_branch
      %57 = sbr.rel (0) target = $region21
    $region20: #{tpu_custom_call.1} parent=1 // pred_region
      %s59 = ssub.s32 160, 160
      %60 = vsyncadd [#allocation9], %s59
      %s61 = sshll.u32 [#allocation8], 4
      %s62 = int_to_ptr.vmem [resolvable:$true] %s61
      %67 = dma.hbm_to_vmem [thread:$0]  %s4, 160, %s62, [#allocation9], 16, 16, 1
    $region21: #{tpu_custom_call.1} parent=1 // pred_fallthru
      _
    // Predicated region
    $region22: #{tpu_custom_call.1} parent=1 // pred_check
      _
    $region23: #{tpu_custom_call.1} parent=1 // pred_check_branch
      %69 = sbr.rel (0) target = $region25
    $region24: #{tpu_custom_call.1} parent=1 // pred_region
      _
    $region25: #{tpu_custom_call.1} parent=1 // pred_fallthru
      _
    // Predicated region
    $region26: #{tpu_custom_call.1} parent=1 // pred_check
      _
    $region27: #{tpu_custom_call.1} parent=1 // pred_check_branch
      %71 = sbr.rel (0) target = $region29
    $region28: #{tpu_custom_call.1} parent=1 // pred_region
      _
    $region29: #{tpu_custom_call.1} parent=1 // pred_fallthru
      _
    // Predicated region
    $region30: #{tpu_custom_call.1} parent=1 // pred_check
      _
    $region31: #{tpu_custom_call.1} parent=1 // pred_check_branch
      %73 = sbr.rel (0) target = $region33
    $region32: #{tpu_custom_call.1} parent=1 // pred_region
      _
    $region33: #{tpu_custom_call.1} parent=1 // pred_fallthru
      _
    // Predicated region
    $region34: #{tpu_custom_call.1} parent=1 // pred_check
      _
    $region35: #{tpu_custom_call.1} parent=1 // pred_check_branch
      %75 = sbr.rel (0) target = $region37
    $region36: #{tpu_custom_call.1} parent=1 // pred_region
      %76 = dma.done [#allocation4], 256
    $region37: #{tpu_custom_call.1} parent=1 // pred_fallthru
      _
    // Predicated region
    $region38: #{tpu_custom_call.1} parent=1 // pred_check
      _
    $region39: #{tpu_custom_call.1} parent=1 // pred_check_branch
      %78 = sbr.rel (0) target = $region41
    $region40: #{tpu_custom_call.1} parent=1 // pred_region
      %79 = dma.done [#allocation6], 256
    $region41: #{tpu_custom_call.1} parent=1 // pred_fallthru
      _
    // Predicated region
    $region42: #{tpu_custom_call.1} parent=1 // pred_check
      _
    $region43: #{tpu_custom_call.1} parent=1 // pred_check_branch
      %81 = sbr.rel (0) target = $region45
    $region44: #{tpu_custom_call.1} parent=1 // pred_region
      %82 = dma.done [#allocation6], 10240
    $region45: #{tpu_custom_call.1} parent=1 // pred_fallthru
      _
    // Predicated region
    $region46: #{tpu_custom_call.1} parent=1 // pred_check
      _
    $region47: #{tpu_custom_call.1} parent=1 // pred_check_branch
      %84 = sbr.rel (0) target = $region49
    $region48: #{tpu_custom_call.1} parent=1 // pred_region
      %85 = dma.done [#allocation9], 160
    $region49: #{tpu_custom_call.1} parent=1 // pred_fallthru
      _
    %v86 = vld [vmem:[#allocation3] sm:$0xff]
    %v87 = vld [vmem:[#allocation3 + $0x8] sm:$0xff]
    %v88 = vld [vmem:[#allocation5] sm:$0xff]
    %v89 = vld [vmem:[#allocation5 + $0x8] sm:$0xff]
    %v90 = vld [vmem:[%s2] sm:$0x1]
    %v92 = vlaneseq
    %v93 = vshrl.u32 %v92, 7
    %v94 = vsub.s32 0, %v93
    %v95 = vrot.slane %v90, %v94
    %vm97 = vcmask 130048
    %v99 = vsel %vm97, %v86, 0
    %v102 = vsel %vm97, %v87, 0
    %104 = vmatprep.subr.mxu0 0.0
    %105 = vmatpush1.msra.mxu0 %v88
    %106 = vmatprep.subr.mxu0 0.0
    %107 = vmatpush1.msra.mxu0 %v89
    %108 = vmatprep.subr.mxu0 0.0
    %109 = vmatpush1.msra.mxu0 0.0
    %110 = vmatprep.subr.mxu0 0.0
    %111 = vmatpush1.msra.mxu0 0.0
    %112 = vmatprep.subr.mxu0 0.0
    %113 = vmatpush1.msra.mxu0 0.0
    %114 = vmatprep.subr.mxu0 0.0
    %115 = vmatpush1.msra.mxu0 0.0
    %116 = vmatprep.subr.mxu0 0.0
    %117 = vmatpush1.msra.mxu0 0.0
    %118 = vmatprep.subr.mxu0 0.0
    %119 = vmatpush1.msra.mxu0 0.0
    %120 = vmatprep.subr.mxu0 0.0
    %121 = vmatpush1.msra.mxu0 0.0
    %122 = vmatprep.subr.mxu0 0.0
    %123 = vmatpush1.msra.mxu0 0.0
    %124 = vmatprep.subr.mxu0 0.0
    %125 = vmatpush1.msra.mxu0 0.0
    %126 = vmatprep.subr.mxu0 0.0
    %127 = vmatpush1.msra.mxu0 0.0
    %128 = vmatprep.subr.mxu0 0.0
    %129 = vmatpush1.msra.mxu0 0.0
    %130 = vmatprep.subr.mxu0 0.0
    %131 = vmatpush1.msra.mxu0 0.0
    %132 = vmatprep.subr.mxu0 0.0
    %133 = vmatpush1.msra.mxu0 0.0
    %134 = vmatprep.subr.mxu0 0.0
    %135 = vmatpush1.msra.mxu0 0.0
    %136 = vmatprep.subr.mxu0 0.0
    %137 = vmatpush1.msra.mxu0 0.0
    %138 = vmatprep.subr.mxu0 0.0
    %139 = vmatpush1.msra.mxu0 0.0
    %140 = vmatprep.subr.mxu0 0.0
    %141 = vmatpush1.msra.mxu0 0.0
    %142 = vmatprep.subr.mxu0 0.0
    %143 = vmatpush1.msra.mxu0 0.0
    %144 = vmatprep.subr.mxu0 0.0
    %145 = vmatpush1.msra.mxu0 0.0
    %146 = vmatprep.subr.mxu0 0.0
    %147 = vmatpush1.msra.mxu0 0.0
    %148 = vmatprep.subr.mxu0 0.0
    %149 = vmatpush1.msra.mxu0 0.0
    %150 = vmatprep.subr.mxu0 0.0
    %151 = vmatpush1.msra.mxu0 0.0
    %152 = vmatprep.subr.mxu0 0.0
    %153 = vmatpush1.msra.mxu0 0.0
    %154 = vmatprep.subr.mxu0 0.0
    %155 = vmatpush1.msra.mxu0 0.0
    %156 = vmatprep.subr.mxu0 0.0
    %157 = vmatpush1.msra.mxu0 0.0
    %158 = vmatprep.subr.mxu0 0.0
    %159 = vmatpush1.msra.mxu0 0.0
    %160 = vmatprep.subr.mxu0 0.0
    %161 = vmatpush1.msra.mxu0 0.0
    %162 = vmatprep.subr.mxu0 0.0
    %163 = vmatpush1.msra.mxu0 0.0
    %164 = vmatprep.subr.mxu0 0.0
    %165 = vmatpush1.msra.mxu0 0.0
    %166 = vmatprep.subr.mxu0 0.0
    %167 = vmatpush1.msra.mxu0 0.0
    %168 = vmatprep.mubr.f32.mxu0 0.0
    %169 = vmatmul.mubr.f32.gmra.mrb[0].mxu0 %v99
    %v170 = vpop.f32.mrb[0].mxu0
    %v171 = vadd.f32 %v95, %v170
    %v172 = vpop.f32.mrb[0].mxu0
    %173 = vmatprep.mubr.f32.mxu0 0.0
    %174 = vmatmul.mubr.f32.gmra.mrb[0].mxu0 %v102
    %v175 = vpop.f32.mrb[0].mxu0
    %v176 = vadd.f32 %v95, %v175
    %v177 = vpop.f32.mrb[0].mxu0
    %178 = vdwg.mxu0
    %v179 = vlaneseq
    %v180 = vshrl.u32 %v179, 7
    %v181 = vadd.s32 %v180, 8
    %vm182 = vcmp.lt.s32.totalorder %v180, 0
    %v183 = vsub.s32 0, %v180
    %v184 = vsel %vm182, %v183, %v180
    %v185 = vshrl.u32 %v184, 3
    %v186 = vand.u32 %v184, 7
    %v187 = vsub.s32 0, %v186
    %v188 = vsel %vm182, %v187, %v186
    %vm189 = vcmp.lt.s32.totalorder %v181, 0
    %v190 = vsub.s32 0, %v181
    %v191 = vsel %vm189, %v190, %v181
    %v192 = vshrl.u32 %v191, 3
    %v193 = vand.u32 %v191, 7
    %v194 = vsub.s32 0, %v193
    %v195 = vsel %vm189, %v194, %v193
    %vm196 = vcmp.ne.s32.totalorder %v188, 0
    %vm197 = vcmp.ne.s32.totalorder %v195, 0
    %vm198 = vcmp.lt.s32.totalorder %v188, 0
    %vm199 = vcmp.lt.s32.totalorder %v195, 0
    %vm200 = vmand %vm198, %vm196
    %vm201 = vmand %vm199, %vm197
    %v202 = vadd.s32 %v188, 8
    %v203 = vadd.s32 %v195, 8
    %v204 = vsel %vm200, %v202, %v188
    %v205 = vsel %vm201, %v203, %v195
    %vm206 = vcmp.ge.s32.totalorder %v204, 2
    %vm207 = vcmp.ge.s32.totalorder %v205, 2
    %vm208 = vcmp.lt.s32.totalorder %v204, 10
    %vm209 = vcmp.lt.s32.totalorder %v205, 10
    %vm210 = vmand %vm206, %vm208
    %vm211 = vmand %vm207, %vm209
    %vm212 = vcmp.ge.s32.totalorder %v204, 1
    %vm213 = vcmp.ge.s32.totalorder %v205, 1
    %vm214 = vcmp.lt.s32.totalorder %v204, 9
    %vm215 = vcmp.lt.s32.totalorder %v205, 9
    %vm216 = vmand %vm212, %vm214
    %vm217 = vmand %vm213, %vm215
    %vm218 = vcmp.ge.s32.totalorder %v204, 4294967295
    %vm219 = vcmp.ge.s32.totalorder %v205, 4294967295
    %vm220 = vcmp.lt.s32.totalorder %v204, 7
    %vm221 = vcmp.lt.s32.totalorder %v205, 7
    %vm222 = vmand %vm218, %vm220
    %vm223 = vmand %vm219, %vm221
    %vm224 = vcmp.ge.s32.totalorder %v204, 4294967294
    %vm225 = vcmp.ge.s32.totalorder %v205, 4294967294
    %vm226 = vcmp.lt.s32.totalorder %v204, 6
    %vm227 = vcmp.lt.s32.totalorder %v205, 6
    %vm228 = vmand %vm224, %vm226
    %vm229 = vmand %vm225, %vm227
    %v230 = vmax.f32 %v171, 0.0
    %v231 = vmax.f32 %v176, 0.0
    %v232 = vld [vmem:[#allocation7] sm:$0xff]
    %v233 = vld [vmem:[#allocation7 + $0x8] sm:$0xff]
    %v234 = vld [vmem:[#allocation7 + $0x10] sm:$0xff]
    %v235 = vld [vmem:[#allocation7 + $0x18] sm:$0xff]
    %v236 = vld [vmem:[#allocation7 + $0x20] sm:$0xff]
    %v237 = vld [vmem:[#allocation7 + $0x28] sm:$0xff]
    %v238 = vld [vmem:[#allocation7 + $0x30] sm:$0xff]
    %v239 = vld [vmem:[#allocation7 + $0x38] sm:$0xff]
    %vm240 = vcmask 261120
    %v242 = vsel %vm240, %v230, 0
    %v245 = vsel %vm240, %v231, 0
    %247 = vmatprep.subr.mxu0 %v233
    %248 = vmatpush1.msra.mxu0 %v232
    %249 = vmatprep.subr.mxu0 %v235
    %250 = vmatpush1.msra.mxu0 %v234
    %251 = vmatprep.subr.mxu0 %v237
    %252 = vmatpush1.msra.mxu0 %v236
    %253 = vmatprep.subr.mxu0 %v239
    %254 = vmatpush1.msra.mxu0 %v238
    %255 = vmatprep.subr.mxu0 0.0
    %256 = vmatpush1.msra.mxu0 0.0
    %257 = vmatprep.subr.mxu0 0.0
    %258 = vmatpush1.msra.mxu0 0.0
    %259 = vmatprep.subr.mxu0 0.0
    %260 = vmatpush1.msra.mxu0 0.0
    %261 = vmatprep.subr.mxu0 0.0
    %262 = vmatpush1.msra.mxu0 0.0
    %263 = vmatprep.subr.mxu0 0.0
    %264 = vmatpush1.msra.mxu0 0.0
    %265 = vmatprep.subr.mxu0 0.0
    %266 = vmatpush1.msra.mxu0 0.0
    %267 = vmatprep.subr.mxu0 0.0
    %268 = vmatpush1.msra.mxu0 0.0
    %269 = vmatprep.subr.mxu0 0.0
    %270 = vmatpush1.msra.mxu0 0.0
    %271 = vmatprep.subr.mxu0 0.0
    %272 = vmatpush1.msra.mxu0 0.0
    %273 = vmatprep.subr.mxu0 0.0
    %274 = vmatpush1.msra.mxu0 0.0
    %275 = vmatprep.subr.mxu0 0.0
    %276 = vmatpush1.msra.mxu0 0.0
    %277 = vmatprep.subr.mxu0 0.0
    %278 = vmatpush1.msra.mxu0 0.0
    %279 = vmatprep.subr.mxu0 0.0
    %280 = vmatpush1.msra.mxu0 0.0
    %281 = vmatprep.subr.mxu0 0.0
    %282 = vmatpush1.msra.mxu0 0.0
    %283 = vmatprep.subr.mxu0 0.0
    %284 = vmatpush1.msra.mxu0 0.0
    %285 = vmatprep.subr.mxu0 0.0
    %286 = vmatpush1.msra.mxu0 0.0
    %287 = vmatprep.subr.mxu0 0.0
    %288 = vmatpush1.msra.mxu0 0.0
    %289 = vmatprep.subr.mxu0 0.0
    %290 = vmatpush1.msra.mxu0 0.0
    %291 = vmatprep.subr.mxu0 0.0
    %292 = vmatpush1.msra.mxu0 0.0
    %293 = vmatprep.subr.mxu0 0.0
    %294 = vmatpush1.msra.mxu0 0.0
    %295 = vmatprep.subr.mxu0 0.0
    %296 = vmatpush1.msra.mxu0 0.0
    %297 = vmatprep.subr.mxu0 0.0
    %298 = vmatpush1.msra.mxu0 0.0
    %299 = vmatprep.subr.mxu0 0.0
    %300 = vmatpush1.msra.mxu0 0.0
    %301 = vmatprep.subr.mxu0 0.0
    %302 = vmatpush1.msra.mxu0 0.0
    %303 = vmatprep.subr.mxu0 0.0
    %304 = vmatpush1.msra.mxu0 0.0
    %305 = vmatprep.subr.mxu0 0.0
    %306 = vmatpush1.msra.mxu0 0.0
    %307 = vmatprep.subr.mxu0 0.0
    %308 = vmatpush1.msra.mxu0 0.0
    %309 = vmatprep.subr.mxu0 0.0
    %310 = vmatpush1.msra.mxu0 0.0
    %311 = vmatprep.mubr.f32.mxu0 0.0
    %312 = vmatmul.mubr.f32.gmra.mrb[0].mxu0 %v242
    %v313 = vpop.f32.mrb[0].mxu0
    %v314 = vadd.f32 0.0, %v313
    %v315 = vpop.f32.mrb[0].mxu0
    %v316 = vadd.f32 0.0, %v315
    %317 = vmatprep.mubr.f32.mxu0 0.0
    %318 = vmatmul.mubr.f32.gmra.mrb[0].mxu0 %v245
    %v319 = vpop.f32.mrb[0].mxu0
    %v320 = vadd.f32 0.0, %v319
    %v321 = vpop.f32.mrb[0].mxu0
    %v322 = vadd.f32 0.0, %v321
    %323 = vdwg.mxu0
    %v324 = vrot.slane %v314, 6
    %v325 = vrot.slane %v320, 6
    %vm326 = vcmp.lt.s32.totalorder %v180, 2
    %v327 = vsel %vm326, %v324, %v325
    %v328 = vsel %vm326, %v325, %v324
    %v329 = vsel %vm210, %v328, 0.0
    %v330 = vsel %vm211, %v327, 0.0
    %333 = vrot.lane.b32.xlu0 %v314, 96
    %v334 = vpop.permute.xlu0 %333
    %335 = vrot.lane.b32.xlu0 %v320, 96
    %v336 = vpop.permute.xlu0 %335
    %v339 = vrot.slane %v334, 7
    %v340 = vrot.slane %v336, 7
    %vm341 = vcmp.lt.s32.totalorder %v180, 1
    %v342 = vsel %vm341, %v339, %v340
    %v343 = vsel %vm341, %v340, %v339
    %v344 = vsel %vm216, %v343, 0.0
    %v345 = vsel %vm217, %v342, 0.0
    %v346 = vadd.f32 %v329, %v344
    %v347 = vadd.f32 %v330, %v345
    %348 = vrot.lane.b32.xlu0 %v314, 64
    %v349 = vpop.permute.xlu0 %348
    %350 = vrot.lane.b32.xlu0 %v320, 64
    %v351 = vpop.permute.xlu0 %350
    %v354 = vadd.f32 %v346, %v349
    %v355 = vadd.f32 %v347, %v351
    %356 = vrot.lane.b32.xlu0 %v314, 32
    %v357 = vpop.permute.xlu0 %356
    %358 = vrot.lane.b32.xlu0 %v320, 32
    %v359 = vpop.permute.xlu0 %358
    %v362 = vrot.slane %v357, 1
    %v363 = vrot.slane %v359, 1
    %vm364 = vcmp.lt.s32.totalorder %v180, 7
    %v365 = vsel %vm364, %v362, %v363
    %v366 = vsel %vm364, %v363, %v362
    %v367 = vsel %vm222, %v365, 0.0
    %v368 = vsel %vm223, %v366, 0.0
    %v369 = vadd.f32 %v354, %v367
    %v370 = vadd.f32 %v355, %v368
    %v371 = vrot.slane %v316, 2
    %v372 = vrot.slane %v322, 2
    %vm373 = vcmp.lt.s32.totalorder %v180, 6
    %v374 = vsel %vm373, %v371, %v372
    %v375 = vsel %vm373, %v372, %v371
    %v376 = vsel %vm228, %v374, 0.0
    %v377 = vsel %vm229, %v375, 0.0
    %v378 = vadd.f32 %v369, %v376
    %v379 = vadd.f32 %v370, %v377
    %v380 = vld [vmem:[#allocation8] sm:$0x1]
    %v382 = vlaneseq
    %v383 = vshrl.u32 %v382, 7
    %v384 = vsub.s32 0, %v383
    %v385 = vrot.slane %v380, %v384
    %v387 = vadd.f32 %v378, %v385
    %v388 = vadd.f32 %v379, %v385
    %v389 = vmax.f32 %v387, 0.0
    %v390 = vmax.f32 %v388, 0.0
    %s391 = scalar_lea.vmem [#allocation7], 64
    %v392 = vld [vmem:[%s391] sm:$0xff]
    %v393 = vld [vmem:[%s391 + $0x8] sm:$0xff]
    %v394 = vld [vmem:[%s391 + $0x10] sm:$0xff]
    %v395 = vld [vmem:[%s391 + $0x18] sm:$0xff]
    %v396 = vld [vmem:[%s391 + $0x20] sm:$0xff]
    %v397 = vld [vmem:[%s391 + $0x28] sm:$0xff]
    %v398 = vld [vmem:[%s391 + $0x30] sm:$0xff]
    %v399 = vld [vmem:[%s391 + $0x38] sm:$0xff]
    %v401 = vsel %vm240, %v389, 0
    %v404 = vsel %vm240, %v390, 0
    %406 = vmatprep.subr.mxu0 %v393
    %407 = vmatpush1.msra.mxu0 %v392
    %408 = vmatprep.subr.mxu0 %v395
    %409 = vmatpush1.msra.mxu0 %v394
    %410 = vmatprep.subr.mxu0 %v397
    %411 = vmatpush1.msra.mxu0 %v396
    %412 = vmatprep.subr.mxu0 %v399
    %413 = vmatpush1.msra.mxu0 %v398
    %414 = vmatprep.subr.mxu0 0.0
    %415 = vmatpush1.msra.mxu0 0.0
    %416 = vmatprep.subr.mxu0 0.0
    %417 = vmatpush1.msra.mxu0 0.0
    %418 = vmatprep.subr.mxu0 0.0
    %419 = vmatpush1.msra.mxu0 0.0
    %420 = vmatprep.subr.mxu0 0.0
    %421 = vmatpush1.msra.mxu0 0.0
    %422 = vmatprep.subr.mxu0 0.0
    %423 = vmatpush1.msra.mxu0 0.0
    %424 = vmatprep.subr.mxu0 0.0
    %425 = vmatpush1.msra.mxu0 0.0
    %426 = vmatprep.subr.mxu0 0.0
    %427 = vmatpush1.msra.mxu0 0.0
    %428 = vmatprep.subr.mxu0 0.0
    %429 = vmatpush1.msra.mxu0 0.0
    %430 = vmatprep.subr.mxu0 0.0
    %431 = vmatpush1.msra.mxu0 0.0
    %432 = vmatprep.subr.mxu0 0.0
    %433 = vmatpush1.msra.mxu0 0.0
    %434 = vmatprep.subr.mxu0 0.0
    %435 = vmatpush1.msra.mxu0 0.0
    %436 = vmatprep.subr.mxu0 0.0
    %437 = vmatpush1.msra.mxu0 0.0
    %438 = vmatprep.subr.mxu0 0.0
    %439 = vmatpush1.msra.mxu0 0.0
    %440 = vmatprep.subr.mxu0 0.0
    %441 = vmatpush1.msra.mxu0 0.0
    %442 = vmatprep.subr.mxu0 0.0
    %443 = vmatpush1.msra.mxu0 0.0
    %444 = vmatprep.subr.mxu0 0.0
    %445 = vmatpush1.msra.mxu0 0.0
    %446 = vmatprep.subr.mxu0 0.0
    %447 = vmatpush1.msra.mxu0 0.0
    %448 = vmatprep.subr.mxu0 0.0
    %449 = vmatpush1.msra.mxu0 0.0
    %450 = vmatprep.subr.mxu0 0.0
    %451 = vmatpush1.msra.mxu0 0.0
    %452 = vmatprep.subr.mxu0 0.0
    %453 = vmatpush1.msra.mxu0 0.0
    %454 = vmatprep.subr.mxu0 0.0
    %455 = vmatpush1.msra.mxu0 0.0
    %456 = vmatprep.subr.mxu0 0.0
    %457 = vmatpush1.msra.mxu0 0.0
    %458 = vmatprep.subr.mxu0 0.0
    %459 = vmatpush1.msra.mxu0 0.0
    %460 = vmatprep.subr.mxu0 0.0
    %461 = vmatpush1.msra.mxu0 0.0
    %462 = vmatprep.subr.mxu0 0.0
    %463 = vmatpush1.msra.mxu0 0.0
    %464 = vmatprep.subr.mxu0 0.0
    %465 = vmatpush1.msra.mxu0 0.0
    %466 = vmatprep.subr.mxu0 0.0
    %467 = vmatpush1.msra.mxu0 0.0
    %468 = vmatprep.subr.mxu0 0.0
    %469 = vmatpush1.msra.mxu0 0.0
    %470 = vmatprep.mubr.f32.mxu0 0.0
    %471 = vmatmul.mubr.f32.gmra.mrb[0].mxu0 %v401
    %v472 = vpop.f32.mrb[0].mxu0
    %v473 = vadd.f32 0.0, %v472
    %v474 = vpop.f32.mrb[0].mxu0
    %v475 = vadd.f32 0.0, %v474
    %476 = vmatprep.mubr.f32.mxu0 0.0
    %477 = vmatmul.mubr.f32.gmra.mrb[0].mxu0 %v404
    %v478 = vpop.f32.mrb[0].mxu0
    %v479 = vadd.f32 0.0, %v478
    %v480 = vpop.f32.mrb[0].mxu0
    %v481 = vadd.f32 0.0, %v480
    %482 = vdwg.mxu0
    %v483 = vrot.slane %v473, 6
    %v484 = vrot.slane %v479, 6
    %v485 = vsel %vm326, %v483, %v484
    %v486 = vsel %vm326, %v484, %v483
    %v487 = vsel %vm210, %v486, 0.0
    %v488 = vsel %vm211, %v485, 0.0
    %491 = vrot.lane.b32.xlu0 %v473, 96
    %v492 = vpop.permute.xlu0 %491
    %493 = vrot.lane.b32.xlu0 %v479, 96
    %v494 = vpop.permute.xlu0 %493
    %v497 = vrot.slane %v492, 7
    %v498 = vrot.slane %v494, 7
    %v499 = vsel %vm341, %v497, %v498
    %v500 = vsel %vm341, %v498, %v497
    %v501 = vsel %vm216, %v500, 0.0
    %v502 = vsel %vm217, %v499, 0.0
    %v503 = vadd.f32 %v487, %v501
    %v504 = vadd.f32 %v488, %v502
    %505 = vrot.lane.b32.xlu0 %v473, 64
    %v506 = vpop.permute.xlu0 %505
    %507 = vrot.lane.b32.xlu0 %v479, 64
    %v508 = vpop.permute.xlu0 %507
    %v511 = vadd.f32 %v503, %v506
    %v512 = vadd.f32 %v504, %v508
    %513 = vrot.lane.b32.xlu0 %v473, 32
    %v514 = vpop.permute.xlu0 %513
    %515 = vrot.lane.b32.xlu0 %v479, 32
    %v516 = vpop.permute.xlu0 %515
    %v519 = vrot.slane %v514, 1
    %v520 = vrot.slane %v516, 1
    %v521 = vsel %vm364, %v519, %v520
    %v522 = vsel %vm364, %v520, %v519
    %v523 = vsel %vm222, %v521, 0.0
    %v524 = vsel %vm223, %v522, 0.0
    %v525 = vadd.f32 %v511, %v523
    %v526 = vadd.f32 %v512, %v524
    %v527 = vrot.slane %v475, 2
    %v528 = vrot.slane %v481, 2
    %v529 = vsel %vm373, %v527, %v528
    %v530 = vsel %vm373, %v528, %v527
    %v531 = vsel %vm228, %v529, 0.0
    %v532 = vsel %vm229, %v530, 0.0
    %v533 = vadd.f32 %v525, %v531
    %v534 = vadd.f32 %v526, %v532
    %s535 = scalar_lea.vmem [#allocation8], 1
    %v536 = vld [vmem:[%s535] sm:$0x1]
    %v538 = vlaneseq
    %v539 = vshrl.u32 %v538, 7
    %v540 = vsub.s32 0, %v539
    %v541 = vrot.slane %v536, %v540
    %v543 = vadd.f32 %v533, %v541
    %v544 = vadd.f32 %v534, %v541
    %v545 = vmul.f32 %v543, 0.3
    %v546 = vmul.f32 %v544, 0.3
    %v547 = vadd.f32 %v171, %v545
    %v548 = vadd.f32 %v176, %v546
    %v549 = vmax.f32 %v547, 0.0
    %v550 = vmax.f32 %v548, 0.0
    %s551 = scalar_lea.vmem [#allocation7], 128
    %v552 = vld [vmem:[%s551] sm:$0xff]
    %v553 = vld [vmem:[%s551 + $0x8] sm:$0xff]
    %v554 = vld [vmem:[%s551 + $0x10] sm:$0xff]
    %v555 = vld [vmem:[%s551 + $0x18] sm:$0xff]
    %v556 = vld [vmem:[%s551 + $0x20] sm:$0xff]
    %v557 = vld [vmem:[%s551 + $0x28] sm:$0xff]
    %v558 = vld [vmem:[%s551 + $0x30] sm:$0xff]
    %v559 = vld [vmem:[%s551 + $0x38] sm:$0xff]
    %v561 = vsel %vm240, %v549, 0
    %v564 = vsel %vm240, %v550, 0
    %566 = vmatprep.subr.mxu0 %v553
    %567 = vmatpush1.msra.mxu0 %v552
    %568 = vmatprep.subr.mxu0 %v555
    %569 = vmatpush1.msra.mxu0 %v554
    %570 = vmatprep.subr.mxu0 %v557
    %571 = vmatpush1.msra.mxu0 %v556
    %572 = vmatprep.subr.mxu0 %v559
    %573 = vmatpush1.msra.mxu0 %v558
    %574 = vmatprep.subr.mxu0 0.0
    %575 = vmatpush1.msra.mxu0 0.0
    %576 = vmatprep.subr.mxu0 0.0
    %577 = vmatpush1.msra.mxu0 0.0
    %578 = vmatprep.subr.mxu0 0.0
    %579 = vmatpush1.msra.mxu0 0.0
    %580 = vmatprep.subr.mxu0 0.0
    %581 = vmatpush1.msra.mxu0 0.0
    %582 = vmatprep.subr.mxu0 0.0
    %583 = vmatpush1.msra.mxu0 0.0
    %584 = vmatprep.subr.mxu0 0.0
    %585 = vmatpush1.msra.mxu0 0.0
    %586 = vmatprep.subr.mxu0 0.0
    %587 = vmatpush1.msra.mxu0 0.0
    %588 = vmatprep.subr.mxu0 0.0
    %589 = vmatpush1.msra.mxu0 0.0
    %590 = vmatprep.subr.mxu0 0.0
    %591 = vmatpush1.msra.mxu0 0.0
    %592 = vmatprep.subr.mxu0 0.0
    %593 = vmatpush1.msra.mxu0 0.0
    %594 = vmatprep.subr.mxu0 0.0
    %595 = vmatpush1.msra.mxu0 0.0
    %596 = vmatprep.subr.mxu0 0.0
    %597 = vmatpush1.msra.mxu0 0.0
    %598 = vmatprep.subr.mxu0 0.0
    %599 = vmatpush1.msra.mxu0 0.0
    %600 = vmatprep.subr.mxu0 0.0
    %601 = vmatpush1.msra.mxu0 0.0
    %602 = vmatprep.subr.mxu0 0.0
    %603 = vmatpush1.msra.mxu0 0.0
    %604 = vmatprep.subr.mxu0 0.0
    %605 = vmatpush1.msra.mxu0 0.0
    %606 = vmatprep.subr.mxu0 0.0
    %607 = vmatpush1.msra.mxu0 0.0
    %608 = vmatprep.subr.mxu0 0.0
    %609 = vmatpush1.msra.mxu0 0.0
    %610 = vmatprep.subr.mxu0 0.0
    %611 = vmatpush1.msra.mxu0 0.0
    %612 = vmatprep.subr.mxu0 0.0
    %613 = vmatpush1.msra.mxu0 0.0
    %614 = vmatprep.subr.mxu0 0.0
    %615 = vmatpush1.msra.mxu0 0.0
    %616 = vmatprep.subr.mxu0 0.0
    %617 = vmatpush1.msra.mxu0 0.0
    %618 = vmatprep.subr.mxu0 0.0
    %619 = vmatpush1.msra.mxu0 0.0
    %620 = vmatprep.subr.mxu0 0.0
    %621 = vmatpush1.msra.mxu0 0.0
    %622 = vmatprep.subr.mxu0 0.0
    %623 = vmatpush1.msra.mxu0 0.0
    %624 = vmatprep.subr.mxu0 0.0
    %625 = vmatpush1.msra.mxu0 0.0
    %626 = vmatprep.subr.mxu0 0.0
    %627 = vmatpush1.msra.mxu0 0.0
    %628 = vmatprep.subr.mxu0 0.0
    %629 = vmatpush1.msra.mxu0 0.0
    %630 = vmatprep.mubr.f32.mxu0 0.0
    %631 = vmatmul.mubr.f32.gmra.mrb[0].mxu0 %v561
    %v632 = vpop.f32.mrb[0].mxu0
    %v633 = vadd.f32 0.0, %v632
    %v634 = vpop.f32.mrb[0].mxu0
    %v635 = vadd.f32 0.0, %v634
    %636 = vmatprep.mubr.f32.mxu0 0.0
    %637 = vmatmul.mubr.f32.gmra.mrb[0].mxu0 %v564
    %v638 = vpop.f32.mrb[0].mxu0
    %v639 = vadd.f32 0.0, %v638
    %v640 = vpop.f32.mrb[0].mxu0
    %v641 = vadd.f32 0.0, %v640
    %642 = vdwg.mxu0
    %v643 = vrot.slane %v633, 6
    %v644 = vrot.slane %v639, 6
    %v645 = vsel %vm326, %v643, %v644
    %v646 = vsel %vm326, %v644, %v643
    %v647 = vsel %vm210, %v646, 0.0
    %v648 = vsel %vm211, %v645, 0.0
    %651 = vrot.lane.b32.xlu0 %v633, 96
    %v652 = vpop.permute.xlu0 %651
    %653 = vrot.lane.b32.xlu0 %v639, 96
    %v654 = vpop.permute.xlu0 %653
    %v657 = vrot.slane %v652, 7
    %v658 = vrot.slane %v654, 7
    %v659 = vsel %vm341, %v657, %v658
    %v660 = vsel %vm341, %v658, %v657
    %v661 = vsel %vm216, %v660, 0.0
    %v662 = vsel %vm217, %v659, 0.0
    %v663 = vadd.f32 %v647, %v661
    %v664 = vadd.f32 %v648, %v662
    %665 = vrot.lane.b32.xlu0 %v633, 64
    %v666 = vpop.permute.xlu0 %665
    %667 = vrot.lane.b32.xlu0 %v639, 64
    %v668 = vpop.permute.xlu0 %667
    %v671 = vadd.f32 %v663, %v666
    %v672 = vadd.f32 %v664, %v668
    %673 = vrot.lane.b32.xlu0 %v633, 32
    %v674 = vpop.permute.xlu0 %673
    %675 = vrot.lane.b32.xlu0 %v639, 32
    %v676 = vpop.permute.xlu0 %675
    %v679 = vrot.slane %v674, 1
    %v680 = vrot.slane %v676, 1
    %v681 = vsel %vm364, %v679, %v680
    %v682 = vsel %vm364, %v680, %v679
    %v683 = vsel %vm222, %v681, 0.0
    %v684 = vsel %vm223, %v682, 0.0
    %v685 = vadd.f32 %v671, %v683
    %v686 = vadd.f32 %v672, %v684
    %v687 = vrot.slane %v635, 2
    %v688 = vrot.slane %v641, 2
    %v689 = vsel %vm373, %v687, %v688
    %v690 = vsel %vm373, %v688, %v687
    %v691 = vsel %vm228, %v689, 0.0
    %v692 = vsel %vm229, %v690, 0.0
    %v693 = vadd.f32 %v685, %v691
    %v694 = vadd.f32 %v686, %v692
    %s695 = scalar_lea.vmem [#allocation8], 2
    %v696 = vld [vmem:[%s695] sm:$0x1]
    %v698 = vlaneseq
    %v699 = vshrl.u32 %v698, 7
    %v700 = vsub.s32 0, %v699
    %v701 = vrot.slane %v696, %v700
    %v703 = vadd.f32 %v693, %v701
    %v704 = vadd.f32 %v694, %v701
    %v705 = vmax.f32 %v703, 0.0
    %v706 = vmax.f32 %v704, 0.0
    %s707 = scalar_lea.vmem [#allocation7], 192
    %v708 = vld [vmem:[%s707] sm:$0xff]
    %v709 = vld [vmem:[%s707 + $0x8] sm:$0xff]
    %v710 = vld [vmem:[%s707 + $0x10] sm:$0xff]
    %v711 = vld [vmem:[%s707 + $0x18] sm:$0xff]
    %v712 = vld [vmem:[%s707 + $0x20] sm:$0xff]
    %v713 = vld [vmem:[%s707 + $0x28] sm:$0xff]
    %v714 = vld [vmem:[%s707 + $0x30] sm:$0xff]
    %v715 = vld [vmem:[%s707 + $0x38] sm:$0xff]
    %v717 = vsel %vm240, %v705, 0
    %v720 = vsel %vm240, %v706, 0
    %722 = vmatprep.subr.mxu0 %v709
    %723 = vmatpush1.msra.mxu0 %v708
    %724 = vmatprep.subr.mxu0 %v711
    %725 = vmatpush1.msra.mxu0 %v710
    %726 = vmatprep.subr.mxu0 %v713
    %727 = vmatpush1.msra.mxu0 %v712
    %728 = vmatprep.subr.mxu0 %v715
    %729 = vmatpush1.msra.mxu0 %v714
    %730 = vmatprep.subr.mxu0 0.0
    %731 = vmatpush1.msra.mxu0 0.0
    %732 = vmatprep.subr.mxu0 0.0
    %733 = vmatpush1.msra.mxu0 0.0
    %734 = vmatprep.subr.mxu0 0.0
    %735 = vmatpush1.msra.mxu0 0.0
    %736 = vmatprep.subr.mxu0 0.0
    %737 = vmatpush1.msra.mxu0 0.0
    %738 = vmatprep.subr.mxu0 0.0
    %739 = vmatpush1.msra.mxu0 0.0
    %740 = vmatprep.subr.mxu0 0.0
    %741 = vmatpush1.msra.mxu0 0.0
    %742 = vmatprep.subr.mxu0 0.0
    %743 = vmatpush1.msra.mxu0 0.0
    %744 = vmatprep.subr.mxu0 0.0
    %745 = vmatpush1.msra.mxu0 0.0
    %746 = vmatprep.subr.mxu0 0.0
    %747 = vmatpush1.msra.mxu0 0.0
    %748 = vmatprep.subr.mxu0 0.0
    %749 = vmatpush1.msra.mxu0 0.0
    %750 = vmatprep.subr.mxu0 0.0
    %751 = vmatpush1.msra.mxu0 0.0
    %752 = vmatprep.subr.mxu0 0.0
    %753 = vmatpush1.msra.mxu0 0.0
    %754 = vmatprep.subr.mxu0 0.0
    %755 = vmatpush1.msra.mxu0 0.0
    %756 = vmatprep.subr.mxu0 0.0
    %757 = vmatpush1.msra.mxu0 0.0
    %758 = vmatprep.subr.mxu0 0.0
    %759 = vmatpush1.msra.mxu0 0.0
    %760 = vmatprep.subr.mxu0 0.0
    %761 = vmatpush1.msra.mxu0 0.0
    %762 = vmatprep.subr.mxu0 0.0
    %763 = vmatpush1.msra.mxu0 0.0
    %764 = vmatprep.subr.mxu0 0.0
    %765 = vmatpush1.msra.mxu0 0.0
    %766 = vmatprep.subr.mxu0 0.0
    %767 = vmatpush1.msra.mxu0 0.0
    %768 = vmatprep.subr.mxu0 0.0
    %769 = vmatpush1.msra.mxu0 0.0
    %770 = vmatprep.subr.mxu0 0.0
    %771 = vmatpush1.msra.mxu0 0.0
    %772 = vmatprep.subr.mxu0 0.0
    %773 = vmatpush1.msra.mxu0 0.0
    %774 = vmatprep.subr.mxu0 0.0
    %775 = vmatpush1.msra.mxu0 0.0
    %776 = vmatprep.subr.mxu0 0.0
    %777 = vmatpush1.msra.mxu0 0.0
    %778 = vmatprep.subr.mxu0 0.0
    %779 = vmatpush1.msra.mxu0 0.0
    %780 = vmatprep.subr.mxu0 0.0
    %781 = vmatpush1.msra.mxu0 0.0
    %782 = vmatprep.subr.mxu0 0.0
    %783 = vmatpush1.msra.mxu0 0.0
    %784 = vmatprep.subr.mxu0 0.0
    %785 = vmatpush1.msra.mxu0 0.0
    %786 = vmatprep.mubr.f32.mxu0 0.0
    %787 = vmatmul.mubr.f32.gmra.mrb[0].mxu0 %v717
    %v788 = vpop.f32.mrb[0].mxu0
    %v789 = vadd.f32 0.0, %v788
    %v790 = vpop.f32.mrb[0].mxu0
    %v791 = vadd.f32 0.0, %v790
    %792 = vmatprep.mubr.f32.mxu0 0.0
    %793 = vmatmul.mubr.f32.gmra.mrb[0].mxu0 %v720
    %v794 = vpop.f32.mrb[0].mxu0
    %v795 = vadd.f32 0.0, %v794
    %v796 = vpop.f32.mrb[0].mxu0
    %v797 = vadd.f32 0.0, %v796
    %798 = vdwg.mxu0
    %v799 = vrot.slane %v789, 6
    %v800 = vrot.slane %v795, 6
    %v801 = vsel %vm326, %v799, %v800
    %v802 = vsel %vm326, %v800, %v799
    %v803 = vsel %vm210, %v802, 0.0
    %v804 = vsel %vm211, %v801, 0.0
    %807 = vrot.lane.b32.xlu0 %v789, 96
    %v808 = vpop.permute.xlu0 %807
    %809 = vrot.lane.b32.xlu0 %v795, 96
    %v810 = vpop.permute.xlu0 %809
    %v813 = vrot.slane %v808, 7
    %v814 = vrot.slane %v810, 7
    %v815 = vsel %vm341, %v813, %v814
    %v816 = vsel %vm341, %v814, %v813
    %v817 = vsel %vm216, %v816, 0.0
    %v818 = vsel %vm217, %v815, 0.0
    %v819 = vadd.f32 %v803, %v817
    %v820 = vadd.f32 %v804, %v818
    %821 = vrot.lane.b32.xlu0 %v789, 64
    %v822 = vpop.permute.xlu0 %821
    %823 = vrot.lane.b32.xlu0 %v795, 64
    %v824 = vpop.permute.xlu0 %823
    %v827 = vadd.f32 %v819, %v822
    %v828 = vadd.f32 %v820, %v824
    %829 = vrot.lane.b32.xlu0 %v789, 32
    %v830 = vpop.permute.xlu0 %829
    %831 = vrot.lane.b32.xlu0 %v795, 32
    %v832 = vpop.permute.xlu0 %831
    %v835 = vrot.slane %v830, 1
    %v836 = vrot.slane %v832, 1
    %v837 = vsel %vm364, %v835, %v836
    %v838 = vsel %vm364, %v836, %v835
    %v839 = vsel %vm222, %v837, 0.0
    %v840 = vsel %vm223, %v838, 0.0
    %v841 = vadd.f32 %v827, %v839
    %v842 = vadd.f32 %v828, %v840
    %v843 = vrot.slane %v791, 2
    %v844 = vrot.slane %v797, 2
    %v845 = vsel %vm373, %v843, %v844
    %v846 = vsel %vm373, %v844, %v843
    %v847 = vsel %vm228, %v845, 0.0
    %v848 = vsel %vm229, %v846, 0.0
    %v849 = vadd.f32 %v841, %v847
    %v850 = vadd.f32 %v842, %v848
    %s851 = scalar_lea.vmem [#allocation8], 3
    %v852 = vld [vmem:[%s851] sm:$0x1]
    %v854 = vlaneseq
    %v855 = vshrl.u32 %v854, 7
    %v856 = vsub.s32 0, %v855
    %v857 = vrot.slane %v852, %v856
    %v859 = vadd.f32 %v849, %v857
    %v860 = vadd.f32 %v850, %v857
    %v861 = vmul.f32 %v859, 0.3
    %v862 = vmul.f32 %v860, 0.3
    %v863 = vadd.f32 %v547, %v861
    %v864 = vadd.f32 %v548, %v862
    %v865 = vmax.f32 %v863, 0.0
    %v866 = vmax.f32 %v864, 0.0
    %s867 = scalar_lea.vmem [#allocation7], 256
    %v868 = vld [vmem:[%s867] sm:$0xff]
    %v869 = vld [vmem:[%s867 + $0x8] sm:$0xff]
    %v870 = vld [vmem:[%s867 + $0x10] sm:$0xff]
    %v871 = vld [vmem:[%s867 + $0x18] sm:$0xff]
    %v872 = vld [vmem:[%s867 + $0x20] sm:$0xff]
    %v873 = vld [vmem:[%s867 + $0x28] sm:$0xff]
    %v874 = vld [vmem:[%s867 + $0x30] sm:$0xff]
    %v875 = vld [vmem:[%s867 + $0x38] sm:$0xff]
    %v877 = vsel %vm240, %v865, 0
    %v880 = vsel %vm240, %v866, 0
    %882 = vmatprep.subr.mxu0 %v869
    %883 = vmatpush1.msra.mxu0 %v868
    %884 = vmatprep.subr.mxu0 %v871
    %885 = vmatpush1.msra.mxu0 %v870
    %886 = vmatprep.subr.mxu0 %v873
    %887 = vmatpush1.msra.mxu0 %v872
    %888 = vmatprep.subr.mxu0 %v875
    %889 = vmatpush1.msra.mxu0 %v874
    %890 = vmatprep.subr.mxu0 0.0
    %891 = vmatpush1.msra.mxu0 0.0
    %892 = vmatprep.subr.mxu0 0.0
    %893 = vmatpush1.msra.mxu0 0.0
    %894 = vmatprep.subr.mxu0 0.0
    %895 = vmatpush1.msra.mxu0 0.0
    %896 = vmatprep.subr.mxu0 0.0
    %897 = vmatpush1.msra.mxu0 0.0
    %898 = vmatprep.subr.mxu0 0.0
    %899 = vmatpush1.msra.mxu0 0.0
    %900 = vmatprep.subr.mxu0 0.0
    %901 = vmatpush1.msra.mxu0 0.0
    %902 = vmatprep.subr.mxu0 0.0
    %903 = vmatpush1.msra.mxu0 0.0
    %904 = vmatprep.subr.mxu0 0.0
    %905 = vmatpush1.msra.mxu0 0.0
    %906 = vmatprep.subr.mxu0 0.0
    %907 = vmatpush1.msra.mxu0 0.0
    %908 = vmatprep.subr.mxu0 0.0
    %909 = vmatpush1.msra.mxu0 0.0
    %910 = vmatprep.subr.mxu0 0.0
    %911 = vmatpush1.msra.mxu0 0.0
    %912 = vmatprep.subr.mxu0 0.0
    %913 = vmatpush1.msra.mxu0 0.0
    %914 = vmatprep.subr.mxu0 0.0
    %915 = vmatpush1.msra.mxu0 0.0
    %916 = vmatprep.subr.mxu0 0.0
    %917 = vmatpush1.msra.mxu0 0.0
    %918 = vmatprep.subr.mxu0 0.0
    %919 = vmatpush1.msra.mxu0 0.0
    %920 = vmatprep.subr.mxu0 0.0
    %921 = vmatpush1.msra.mxu0 0.0
    %922 = vmatprep.subr.mxu0 0.0
    %923 = vmatpush1.msra.mxu0 0.0
    %924 = vmatprep.subr.mxu0 0.0
    %925 = vmatpush1.msra.mxu0 0.0
    %926 = vmatprep.subr.mxu0 0.0
    %927 = vmatpush1.msra.mxu0 0.0
    %928 = vmatprep.subr.mxu0 0.0
    %929 = vmatpush1.msra.mxu0 0.0
    %930 = vmatprep.subr.mxu0 0.0
    %931 = vmatpush1.msra.mxu0 0.0
    %932 = vmatprep.subr.mxu0 0.0
    %933 = vmatpush1.msra.mxu0 0.0
    %934 = vmatprep.subr.mxu0 0.0
    %935 = vmatpush1.msra.mxu0 0.0
    %936 = vmatprep.subr.mxu0 0.0
    %937 = vmatpush1.msra.mxu0 0.0
    %938 = vmatprep.subr.mxu0 0.0
    %939 = vmatpush1.msra.mxu0 0.0
    %940 = vmatprep.subr.mxu0 0.0
    %941 = vmatpush1.msra.mxu0 0.0
    %942 = vmatprep.subr.mxu0 0.0
    %943 = vmatpush1.msra.mxu0 0.0
    %944 = vmatprep.subr.mxu0 0.0
    %945 = vmatpush1.msra.mxu0 0.0
    %946 = vmatprep.mubr.f32.mxu0 0.0
    %947 = vmatmul.mubr.f32.gmra.mrb[0].mxu0 %v877
    %v948 = vpop.f32.mrb[0].mxu0
    %v949 = vadd.f32 0.0, %v948
    %v950 = vpop.f32.mrb[0].mxu0
    %v951 = vadd.f32 0.0, %v950
    %952 = vmatprep.mubr.f32.mxu0 0.0
    %953 = vmatmul.mubr.f32.gmra.mrb[0].mxu0 %v880
    %v954 = vpop.f32.mrb[0].mxu0
    %v955 = vadd.f32 0.0, %v954
    %v956 = vpop.f32.mrb[0].mxu0
    %v957 = vadd.f32 0.0, %v956
    %958 = vdwg.mxu0
    %v959 = vrot.slane %v949, 6
    %v960 = vrot.slane %v955, 6
    %v961 = vsel %vm326, %v959, %v960
    %v962 = vsel %vm326, %v960, %v959
    %v963 = vsel %vm210, %v962, 0.0
    %v964 = vsel %vm211, %v961, 0.0
    %967 = vrot.lane.b32.xlu0 %v949, 96
    %v968 = vpop.permute.xlu0 %967
    %969 = vrot.lane.b32.xlu0 %v955, 96
    %v970 = vpop.permute.xlu0 %969
    %v973 = vrot.slane %v968, 7
    %v974 = vrot.slane %v970, 7
    %v975 = vsel %vm341, %v973, %v974
    %v976 = vsel %vm341, %v974, %v973
    %v977 = vsel %vm216, %v976, 0.0
    %v978 = vsel %vm217, %v975, 0.0
    %v979 = vadd.f32 %v963, %v977
    %v980 = vadd.f32 %v964, %v978
    %981 = vrot.lane.b32.xlu0 %v949, 64
    %v982 = vpop.permute.xlu0 %981
    %983 = vrot.lane.b32.xlu0 %v955, 64
    %v984 = vpop.permute.xlu0 %983
    %v987 = vadd.f32 %v979, %v982
    %v988 = vadd.f32 %v980, %v984
    %989 = vrot.lane.b32.xlu0 %v949, 32
    %v990 = vpop.permute.xlu0 %989
    %991 = vrot.lane.b32.xlu0 %v955, 32
    %v992 = vpop.permute.xlu0 %991
    %v995 = vrot.slane %v990, 1
    %v996 = vrot.slane %v992, 1
    %v997 = vsel %vm364, %v995, %v996
    %v998 = vsel %vm364, %v996, %v995
    %v999 = vsel %vm222, %v997, 0.0
    %v1000 = vsel %vm223, %v998, 0.0
    %v1001 = vadd.f32 %v987, %v999
    %v1002 = vadd.f32 %v988, %v1000
    %v1003 = vrot.slane %v951, 2
    %v1004 = vrot.slane %v957, 2
    %v1005 = vsel %vm373, %v1003, %v1004
    %v1006 = vsel %vm373, %v1004, %v1003
    %v1007 = vsel %vm228, %v1005, 0.0
    %v1008 = vsel %vm229, %v1006, 0.0
    %v1009 = vadd.f32 %v1001, %v1007
    %v1010 = vadd.f32 %v1002, %v1008
    %s1011 = scalar_lea.vmem [#allocation8], 4
    %v1012 = vld [vmem:[%s1011] sm:$0x1]
    %v1014 = vlaneseq
    %v1015 = vshrl.u32 %v1014, 7
    %v1016 = vsub.s32 0, %v1015
    %v1017 = vrot.slane %v1012, %v1016
    %v1019 = vadd.f32 %v1009, %v1017
    %v1020 = vadd.f32 %v1010, %v1017
    %v1021 = vmax.f32 %v1019, 0.0
    %v1022 = vmax.f32 %v1020, 0.0
    %s1023 = scalar_lea.vmem [#allocation7], 320
    %v1024 = vld [vmem:[%s1023] sm:$0xff]
    %v1025 = vld [vmem:[%s1023 + $0x8] sm:$0xff]
    %v1026 = vld [vmem:[%s1023 + $0x10] sm:$0xff]
    %v1027 = vld [vmem:[%s1023 + $0x18] sm:$0xff]
    %v1028 = vld [vmem:[%s1023 + $0x20] sm:$0xff]
    %v1029 = vld [vmem:[%s1023 + $0x28] sm:$0xff]
    %v1030 = vld [vmem:[%s1023 + $0x30] sm:$0xff]
    %v1031 = vld [vmem:[%s1023 + $0x38] sm:$0xff]
    %v1033 = vsel %vm240, %v1021, 0
    %v1036 = vsel %vm240, %v1022, 0
    %1038 = vmatprep.subr.mxu0 %v1025
    %1039 = vmatpush1.msra.mxu0 %v1024
    %1040 = vmatprep.subr.mxu0 %v1027
    %1041 = vmatpush1.msra.mxu0 %v1026
    %1042 = vmatprep.subr.mxu0 %v1029
    %1043 = vmatpush1.msra.mxu0 %v1028
    %1044 = vmatprep.subr.mxu0 %v1031
    %1045 = vmatpush1.msra.mxu0 %v1030
    %1046 = vmatprep.subr.mxu0 0.0
    %1047 = vmatpush1.msra.mxu0 0.0
    %1048 = vmatprep.subr.mxu0 0.0
    %1049 = vmatpush1.msra.mxu0 0.0
    %1050 = vmatprep.subr.mxu0 0.0
    %1051 = vmatpush1.msra.mxu0 0.0
    %1052 = vmatprep.subr.mxu0 0.0
    %1053 = vmatpush1.msra.mxu0 0.0
    %1054 = vmatprep.subr.mxu0 0.0
    %1055 = vmatpush1.msra.mxu0 0.0
    %1056 = vmatprep.subr.mxu0 0.0
    %1057 = vmatpush1.msra.mxu0 0.0
    %1058 = vmatprep.subr.mxu0 0.0
    %1059 = vmatpush1.msra.mxu0 0.0
    %1060 = vmatprep.subr.mxu0 0.0
    %1061 = vmatpush1.msra.mxu0 0.0
    %1062 = vmatprep.subr.mxu0 0.0
    %1063 = vmatpush1.msra.mxu0 0.0
    %1064 = vmatprep.subr.mxu0 0.0
    %1065 = vmatpush1.msra.mxu0 0.0
    %1066 = vmatprep.subr.mxu0 0.0
    %1067 = vmatpush1.msra.mxu0 0.0
    %1068 = vmatprep.subr.mxu0 0.0
    %1069 = vmatpush1.msra.mxu0 0.0
    %1070 = vmatprep.subr.mxu0 0.0
    %1071 = vmatpush1.msra.mxu0 0.0
    %1072 = vmatprep.subr.mxu0 0.0
    %1073 = vmatpush1.msra.mxu0 0.0
    %1074 = vmatprep.subr.mxu0 0.0
    %1075 = vmatpush1.msra.mxu0 0.0
    %1076 = vmatprep.subr.mxu0 0.0
    %1077 = vmatpush1.msra.mxu0 0.0
    %1078 = vmatprep.subr.mxu0 0.0
    %1079 = vmatpush1.msra.mxu0 0.0
    %1080 = vmatprep.subr.mxu0 0.0
    %1081 = vmatpush1.msra.mxu0 0.0
    %1082 = vmatprep.subr.mxu0 0.0
    %1083 = vmatpush1.msra.mxu0 0.0
    %1084 = vmatprep.subr.mxu0 0.0
    %1085 = vmatpush1.msra.mxu0 0.0
    %1086 = vmatprep.subr.mxu0 0.0
    %1087 = vmatpush1.msra.mxu0 0.0
    %1088 = vmatprep.subr.mxu0 0.0
    %1089 = vmatpush1.msra.mxu0 0.0
    %1090 = vmatprep.subr.mxu0 0.0
    %1091 = vmatpush1.msra.mxu0 0.0
    %1092 = vmatprep.subr.mxu0 0.0
    %1093 = vmatpush1.msra.mxu0 0.0
    %1094 = vmatprep.subr.mxu0 0.0
    %1095 = vmatpush1.msra.mxu0 0.0
    %1096 = vmatprep.subr.mxu0 0.0
    %1097 = vmatpush1.msra.mxu0 0.0
    %1098 = vmatprep.subr.mxu0 0.0
    %1099 = vmatpush1.msra.mxu0 0.0
    %1100 = vmatprep.subr.mxu0 0.0
    %1101 = vmatpush1.msra.mxu0 0.0
    %1102 = vmatprep.mubr.f32.mxu0 0.0
    %1103 = vmatmul.mubr.f32.gmra.mrb[0].mxu0 %v1033
    %v1104 = vpop.f32.mrb[0].mxu0
    %v1105 = vadd.f32 0.0, %v1104
    %v1106 = vpop.f32.mrb[0].mxu0
    %v1107 = vadd.f32 0.0, %v1106
    %1108 = vmatprep.mubr.f32.mxu0 0.0
    %1109 = vmatmul.mubr.f32.gmra.mrb[0].mxu0 %v1036
    %v1110 = vpop.f32.mrb[0].mxu0
    %v1111 = vadd.f32 0.0, %v1110
    %v1112 = vpop.f32.mrb[0].mxu0
    %v1113 = vadd.f32 0.0, %v1112
    %1114 = vdwg.mxu0
    %v1115 = vrot.slane %v1105, 6
    %v1116 = vrot.slane %v1111, 6
    %v1117 = vsel %vm326, %v1115, %v1116
    %v1118 = vsel %vm326, %v1116, %v1115
    %v1119 = vsel %vm210, %v1118, 0.0
    %v1120 = vsel %vm211, %v1117, 0.0
    %1123 = vrot.lane.b32.xlu0 %v1105, 96
    %v1124 = vpop.permute.xlu0 %1123
    %1125 = vrot.lane.b32.xlu0 %v1111, 96
    %v1126 = vpop.permute.xlu0 %1125
    %v1129 = vrot.slane %v1124, 7
    %v1130 = vrot.slane %v1126, 7
    %v1131 = vsel %vm341, %v1129, %v1130
    %v1132 = vsel %vm341, %v1130, %v1129
    %v1133 = vsel %vm216, %v1132, 0.0
    %v1134 = vsel %vm217, %v1131, 0.0
    %v1135 = vadd.f32 %v1119, %v1133
    %v1136 = vadd.f32 %v1120, %v1134
    %1137 = vrot.lane.b32.xlu0 %v1105, 64
    %v1138 = vpop.permute.xlu0 %1137
    %1139 = vrot.lane.b32.xlu0 %v1111, 64
    %v1140 = vpop.permute.xlu0 %1139
    %v1143 = vadd.f32 %v1135, %v1138
    %v1144 = vadd.f32 %v1136, %v1140
    %1145 = vrot.lane.b32.xlu0 %v1105, 32
    %v1146 = vpop.permute.xlu0 %1145
    %1147 = vrot.lane.b32.xlu0 %v1111, 32
    %v1148 = vpop.permute.xlu0 %1147
    %v1151 = vrot.slane %v1146, 1
    %v1152 = vrot.slane %v1148, 1
    %v1153 = vsel %vm364, %v1151, %v1152
    %v1154 = vsel %vm364, %v1152, %v1151
    %v1155 = vsel %vm222, %v1153, 0.0
    %v1156 = vsel %vm223, %v1154, 0.0
    %v1157 = vadd.f32 %v1143, %v1155
    %v1158 = vadd.f32 %v1144, %v1156
    %v1159 = vrot.slane %v1107, 2
    %v1160 = vrot.slane %v1113, 2
    %v1161 = vsel %vm373, %v1159, %v1160
    %v1162 = vsel %vm373, %v1160, %v1159
    %v1163 = vsel %vm228, %v1161, 0.0
    %v1164 = vsel %vm229, %v1162, 0.0
    %v1165 = vadd.f32 %v1157, %v1163
    %v1166 = vadd.f32 %v1158, %v1164
    %s1167 = scalar_lea.vmem [#allocation8], 5
    %v1168 = vld [vmem:[%s1167] sm:$0x1]
    %v1170 = vlaneseq
    %v1171 = vshrl.u32 %v1170, 7
    %v1172 = vsub.s32 0, %v1171
    %v1173 = vrot.slane %v1168, %v1172
    %v1175 = vadd.f32 %v1165, %v1173
    %v1176 = vadd.f32 %v1166, %v1173
    %v1177 = vmul.f32 %v1175, 0.3
    %v1178 = vmul.f32 %v1176, 0.3
    %v1179 = vadd.f32 %v863, %v1177
    %v1180 = vadd.f32 %v864, %v1178
    %v1181 = vmax.f32 %v1179, 0.0
    %v1182 = vmax.f32 %v1180, 0.0
    %s1183 = scalar_lea.vmem [#allocation7], 384
    %v1184 = vld [vmem:[%s1183] sm:$0xff]
    %v1185 = vld [vmem:[%s1183 + $0x8] sm:$0xff]
    %v1186 = vld [vmem:[%s1183 + $0x10] sm:$0xff]
    %v1187 = vld [vmem:[%s1183 + $0x18] sm:$0xff]
    %v1188 = vld [vmem:[%s1183 + $0x20] sm:$0xff]
    %v1189 = vld [vmem:[%s1183 + $0x28] sm:$0xff]
    %v1190 = vld [vmem:[%s1183 + $0x30] sm:$0xff]
    %v1191 = vld [vmem:[%s1183 + $0x38] sm:$0xff]
    %v1193 = vsel %vm240, %v1181, 0
    %v1196 = vsel %vm240, %v1182, 0
    %1198 = vmatprep.subr.mxu0 %v1185
    %1199 = vmatpush1.msra.mxu0 %v1184
    %1200 = vmatprep.subr.mxu0 %v1187
    %1201 = vmatpush1.msra.mxu0 %v1186
    %1202 = vmatprep.subr.mxu0 %v1189
    %1203 = vmatpush1.msra.mxu0 %v1188
    %1204 = vmatprep.subr.mxu0 %v1191
    %1205 = vmatpush1.msra.mxu0 %v1190
    %1206 = vmatprep.subr.mxu0 0.0
    %1207 = vmatpush1.msra.mxu0 0.0
    %1208 = vmatprep.subr.mxu0 0.0
    %1209 = vmatpush1.msra.mxu0 0.0
    %1210 = vmatprep.subr.mxu0 0.0
    %1211 = vmatpush1.msra.mxu0 0.0
    %1212 = vmatprep.subr.mxu0 0.0
    %1213 = vmatpush1.msra.mxu0 0.0
    %1214 = vmatprep.subr.mxu0 0.0
    %1215 = vmatpush1.msra.mxu0 0.0
    %1216 = vmatprep.subr.mxu0 0.0
    %1217 = vmatpush1.msra.mxu0 0.0
    %1218 = vmatprep.subr.mxu0 0.0
    %1219 = vmatpush1.msra.mxu0 0.0
    %1220 = vmatprep.subr.mxu0 0.0
    %1221 = vmatpush1.msra.mxu0 0.0
    %1222 = vmatprep.subr.mxu0 0.0
    %1223 = vmatpush1.msra.mxu0 0.0
    %1224 = vmatprep.subr.mxu0 0.0
    %1225 = vmatpush1.msra.mxu0 0.0
    %1226 = vmatprep.subr.mxu0 0.0
    %1227 = vmatpush1.msra.mxu0 0.0
    %1228 = vmatprep.subr.mxu0 0.0
    %1229 = vmatpush1.msra.mxu0 0.0
    %1230 = vmatprep.subr.mxu0 0.0
    %1231 = vmatpush1.msra.mxu0 0.0
    %1232 = vmatprep.subr.mxu0 0.0
    %1233 = vmatpush1.msra.mxu0 0.0
    %1234 = vmatprep.subr.mxu0 0.0
    %1235 = vmatpush1.msra.mxu0 0.0
    %1236 = vmatprep.subr.mxu0 0.0
    %1237 = vmatpush1.msra.mxu0 0.0
    %1238 = vmatprep.subr.mxu0 0.0
    %1239 = vmatpush1.msra.mxu0 0.0
    %1240 = vmatprep.subr.mxu0 0.0
    %1241 = vmatpush1.msra.mxu0 0.0
    %1242 = vmatprep.subr.mxu0 0.0
    %1243 = vmatpush1.msra.mxu0 0.0
    %1244 = vmatprep.subr.mxu0 0.0
    %1245 = vmatpush1.msra.mxu0 0.0
    %1246 = vmatprep.subr.mxu0 0.0
    %1247 = vmatpush1.msra.mxu0 0.0
    %1248 = vmatprep.subr.mxu0 0.0
    %1249 = vmatpush1.msra.mxu0 0.0
    %1250 = vmatprep.subr.mxu0 0.0
    %1251 = vmatpush1.msra.mxu0 0.0
    %1252 = vmatprep.subr.mxu0 0.0
    %1253 = vmatpush1.msra.mxu0 0.0
    %1254 = vmatprep.subr.mxu0 0.0
    %1255 = vmatpush1.msra.mxu0 0.0
    %1256 = vmatprep.subr.mxu0 0.0
    %1257 = vmatpush1.msra.mxu0 0.0
    %1258 = vmatprep.subr.mxu0 0.0
    %1259 = vmatpush1.msra.mxu0 0.0
    %1260 = vmatprep.subr.mxu0 0.0
    %1261 = vmatpush1.msra.mxu0 0.0
    %1262 = vmatprep.mubr.f32.mxu0 0.0
    %1263 = vmatmul.mubr.f32.gmra.mrb[0].mxu0 %v1193
    %v1264 = vpop.f32.mrb[0].mxu0
    %v1265 = vadd.f32 0.0, %v1264
    %v1266 = vpop.f32.mrb[0].mxu0
    %v1267 = vadd.f32 0.0, %v1266
    %1268 = vmatprep.mubr.f32.mxu0 0.0
    %1269 = vmatmul.mubr.f32.gmra.mrb[0].mxu0 %v1196
    %v1270 = vpop.f32.mrb[0].mxu0
    %v1271 = vadd.f32 0.0, %v1270
    %v1272 = vpop.f32.mrb[0].mxu0
    %v1273 = vadd.f32 0.0, %v1272
    %1274 = vdwg.mxu0
    %v1275 = vrot.slane %v1265, 6
    %v1276 = vrot.slane %v1271, 6
    %v1277 = vsel %vm326, %v1275, %v1276
    %v1278 = vsel %vm326, %v1276, %v1275
    %v1279 = vsel %vm210, %v1278, 0.0
    %v1280 = vsel %vm211, %v1277, 0.0
    %1283 = vrot.lane.b32.xlu0 %v1265, 96
    %v1284 = vpop.permute.xlu0 %1283
    %1285 = vrot.lane.b32.xlu0 %v1271, 96
    %v1286 = vpop.permute.xlu0 %1285
    %v1289 = vrot.slane %v1284, 7
    %v1290 = vrot.slane %v1286, 7
    %v1291 = vsel %vm341, %v1289, %v1290
    %v1292 = vsel %vm341, %v1290, %v1289
    %v1293 = vsel %vm216, %v1292, 0.0
    %v1294 = vsel %vm217, %v1291, 0.0
    %v1295 = vadd.f32 %v1279, %v1293
    %v1296 = vadd.f32 %v1280, %v1294
    %1297 = vrot.lane.b32.xlu0 %v1265, 64
    %v1298 = vpop.permute.xlu0 %1297
    %1299 = vrot.lane.b32.xlu0 %v1271, 64
    %v1300 = vpop.permute.xlu0 %1299
    %v1303 = vadd.f32 %v1295, %v1298
    %v1304 = vadd.f32 %v1296, %v1300
    %1305 = vrot.lane.b32.xlu0 %v1265, 32
    %v1306 = vpop.permute.xlu0 %1305
    %1307 = vrot.lane.b32.xlu0 %v1271, 32
    %v1308 = vpop.permute.xlu0 %1307
    %v1311 = vrot.slane %v1306, 1
    %v1312 = vrot.slane %v1308, 1
    %v1313 = vsel %vm364, %v1311, %v1312
    %v1314 = vsel %vm364, %v1312, %v1311
    %v1315 = vsel %vm222, %v1313, 0.0
    %v1316 = vsel %vm223, %v1314, 0.0
    %v1317 = vadd.f32 %v1303, %v1315
    %v1318 = vadd.f32 %v1304, %v1316
    %v1319 = vrot.slane %v1267, 2
    %v1320 = vrot.slane %v1273, 2
    %v1321 = vsel %vm373, %v1319, %v1320
    %v1322 = vsel %vm373, %v1320, %v1319
    %v1323 = vsel %vm228, %v1321, 0.0
    %v1324 = vsel %vm229, %v1322, 0.0
    %v1325 = vadd.f32 %v1317, %v1323
    %v1326 = vadd.f32 %v1318, %v1324
    %s1327 = scalar_lea.vmem [#allocation8], 6
    %v1328 = vld [vmem:[%s1327] sm:$0x1]
    %v1330 = vlaneseq
    %v1331 = vshrl.u32 %v1330, 7
    %v1332 = vsub.s32 0, %v1331
    %v1333 = vrot.slane %v1328, %v1332
    %v1335 = vadd.f32 %v1325, %v1333
    %v1336 = vadd.f32 %v1326, %v1333
    %v1337 = vmax.f32 %v1335, 0.0
    %v1338 = vmax.f32 %v1336, 0.0
    %s1339 = scalar_lea.vmem [#allocation7], 448
    %v1340 = vld [vmem:[%s1339] sm:$0xff]
    %v1341 = vld [vmem:[%s1339 + $0x8] sm:$0xff]
    %v1342 = vld [vmem:[%s1339 + $0x10] sm:$0xff]
    %v1343 = vld [vmem:[%s1339 + $0x18] sm:$0xff]
    %v1344 = vld [vmem:[%s1339 + $0x20] sm:$0xff]
    %v1345 = vld [vmem:[%s1339 + $0x28] sm:$0xff]
    %v1346 = vld [vmem:[%s1339 + $0x30] sm:$0xff]
    %v1347 = vld [vmem:[%s1339 + $0x38] sm:$0xff]
    %v1349 = vsel %vm240, %v1337, 0
    %v1352 = vsel %vm240, %v1338, 0
    %1354 = vmatprep.subr.mxu0 %v1341
    %1355 = vmatpush1.msra.mxu0 %v1340
    %1356 = vmatprep.subr.mxu0 %v1343
    %1357 = vmatpush1.msra.mxu0 %v1342
    %1358 = vmatprep.subr.mxu0 %v1345
    %1359 = vmatpush1.msra.mxu0 %v1344
    %1360 = vmatprep.subr.mxu0 %v1347
    %1361 = vmatpush1.msra.mxu0 %v1346
    %1362 = vmatprep.subr.mxu0 0.0
    %1363 = vmatpush1.msra.mxu0 0.0
    %1364 = vmatprep.subr.mxu0 0.0
    %1365 = vmatpush1.msra.mxu0 0.0
    %1366 = vmatprep.subr.mxu0 0.0
    %1367 = vmatpush1.msra.mxu0 0.0
    %1368 = vmatprep.subr.mxu0 0.0
    %1369 = vmatpush1.msra.mxu0 0.0
    %1370 = vmatprep.subr.mxu0 0.0
    %1371 = vmatpush1.msra.mxu0 0.0
    %1372 = vmatprep.subr.mxu0 0.0
    %1373 = vmatpush1.msra.mxu0 0.0
    %1374 = vmatprep.subr.mxu0 0.0
    %1375 = vmatpush1.msra.mxu0 0.0
    %1376 = vmatprep.subr.mxu0 0.0
    %1377 = vmatpush1.msra.mxu0 0.0
    %1378 = vmatprep.subr.mxu0 0.0
    %1379 = vmatpush1.msra.mxu0 0.0
    %1380 = vmatprep.subr.mxu0 0.0
    %1381 = vmatpush1.msra.mxu0 0.0
    %1382 = vmatprep.subr.mxu0 0.0
    %1383 = vmatpush1.msra.mxu0 0.0
    %1384 = vmatprep.subr.mxu0 0.0
    %1385 = vmatpush1.msra.mxu0 0.0
    %1386 = vmatprep.subr.mxu0 0.0
    %1387 = vmatpush1.msra.mxu0 0.0
    %1388 = vmatprep.subr.mxu0 0.0
    %1389 = vmatpush1.msra.mxu0 0.0
    %1390 = vmatprep.subr.mxu0 0.0
    %1391 = vmatpush1.msra.mxu0 0.0
    %1392 = vmatprep.subr.mxu0 0.0
    %1393 = vmatpush1.msra.mxu0 0.0
    %1394 = vmatprep.subr.mxu0 0.0
    %1395 = vmatpush1.msra.mxu0 0.0
    %1396 = vmatprep.subr.mxu0 0.0
    %1397 = vmatpush1.msra.mxu0 0.0
    %1398 = vmatprep.subr.mxu0 0.0
    %1399 = vmatpush1.msra.mxu0 0.0
    %1400 = vmatprep.subr.mxu0 0.0
    %1401 = vmatpush1.msra.mxu0 0.0
    %1402 = vmatprep.subr.mxu0 0.0
    %1403 = vmatpush1.msra.mxu0 0.0
    %1404 = vmatprep.subr.mxu0 0.0
    %1405 = vmatpush1.msra.mxu0 0.0
    %1406 = vmatprep.subr.mxu0 0.0
    %1407 = vmatpush1.msra.mxu0 0.0
    %1408 = vmatprep.subr.mxu0 0.0
    %1409 = vmatpush1.msra.mxu0 0.0
    %1410 = vmatprep.subr.mxu0 0.0
    %1411 = vmatpush1.msra.mxu0 0.0
    %1412 = vmatprep.subr.mxu0 0.0
    %1413 = vmatpush1.msra.mxu0 0.0
    %1414 = vmatprep.subr.mxu0 0.0
    %1415 = vmatpush1.msra.mxu0 0.0
    %1416 = vmatprep.subr.mxu0 0.0
    %1417 = vmatpush1.msra.mxu0 0.0
    %1418 = vmatprep.mubr.f32.mxu0 0.0
    %1419 = vmatmul.mubr.f32.gmra.mrb[0].mxu0 %v1349
    %v1420 = vpop.f32.mrb[0].mxu0
    %v1421 = vadd.f32 0.0, %v1420
    %v1422 = vpop.f32.mrb[0].mxu0
    %v1423 = vadd.f32 0.0, %v1422
    %1424 = vmatprep.mubr.f32.mxu0 0.0
    %1425 = vmatmul.mubr.f32.gmra.mrb[0].mxu0 %v1352
    %v1426 = vpop.f32.mrb[0].mxu0
    %v1427 = vadd.f32 0.0, %v1426
    %v1428 = vpop.f32.mrb[0].mxu0
    %v1429 = vadd.f32 0.0, %v1428
    %1430 = vdwg.mxu0
    %v1431 = vrot.slane %v1421, 6
    %v1432 = vrot.slane %v1427, 6
    %v1433 = vsel %vm326, %v1431, %v1432
    %v1434 = vsel %vm326, %v1432, %v1431
    %v1435 = vsel %vm210, %v1434, 0.0
    %v1436 = vsel %vm211, %v1433, 0.0
    %1439 = vrot.lane.b32.xlu0 %v1421, 96
    %v1440 = vpop.permute.xlu0 %1439
    %1441 = vrot.lane.b32.xlu0 %v1427, 96
    %v1442 = vpop.permute.xlu0 %1441
    %v1445 = vrot.slane %v1440, 7
    %v1446 = vrot.slane %v1442, 7
    %v1447 = vsel %vm341, %v1445, %v1446
    %v1448 = vsel %vm341, %v1446, %v1445
    %v1449 = vsel %vm216, %v1448, 0.0
    %v1450 = vsel %vm217, %v1447, 0.0
    %v1451 = vadd.f32 %v1435, %v1449
    %v1452 = vadd.f32 %v1436, %v1450
    %1453 = vrot.lane.b32.xlu0 %v1421, 64
    %v1454 = vpop.permute.xlu0 %1453
    %1455 = vrot.lane.b32.xlu0 %v1427, 64
    %v1456 = vpop.permute.xlu0 %1455
    %v1459 = vadd.f32 %v1451, %v1454
    %v1460 = vadd.f32 %v1452, %v1456
    %1461 = vrot.lane.b32.xlu0 %v1421, 32
    %v1462 = vpop.permute.xlu0 %1461
    %1463 = vrot.lane.b32.xlu0 %v1427, 32
    %v1464 = vpop.permute.xlu0 %1463
    %v1467 = vrot.slane %v1462, 1
    %v1468 = vrot.slane %v1464, 1
    %v1469 = vsel %vm364, %v1467, %v1468
    %v1470 = vsel %vm364, %v1468, %v1467
    %v1471 = vsel %vm222, %v1469, 0.0
    %v1472 = vsel %vm223, %v1470, 0.0
    %v1473 = vadd.f32 %v1459, %v1471
    %v1474 = vadd.f32 %v1460, %v1472
    %v1475 = vrot.slane %v1423, 2
    %v1476 = vrot.slane %v1429, 2
    %v1477 = vsel %vm373, %v1475, %v1476
    %v1478 = vsel %vm373, %v1476, %v1475
    %v1479 = vsel %vm228, %v1477, 0.0
    %v1480 = vsel %vm229, %v1478, 0.0
    %v1481 = vadd.f32 %v1473, %v1479
    %v1482 = vadd.f32 %v1474, %v1480
    %s1483 = scalar_lea.vmem [#allocation8], 7
    %v1484 = vld [vmem:[%s1483] sm:$0x1]
    %v1486 = vlaneseq
    %v1487 = vshrl.u32 %v1486, 7
    %v1488 = vsub.s32 0, %v1487
    %v1489 = vrot.slane %v1484, %v1488
    %v1491 = vadd.f32 %v1481, %v1489
    %v1492 = vadd.f32 %v1482, %v1489
    %v1493 = vmul.f32 %v1491, 0.3
    %v1494 = vmul.f32 %v1492, 0.3
    %v1495 = vadd.f32 %v1179, %v1493
    %v1496 = vadd.f32 %v1180, %v1494
    %v1497 = vmax.f32 %v1495, 0.0
    %v1498 = vmax.f32 %v1496, 0.0
    %s1499 = scalar_lea.vmem [#allocation7], 512
    %v1500 = vld [vmem:[%s1499] sm:$0xff]
    %v1501 = vld [vmem:[%s1499 + $0x8] sm:$0xff]
    %v1502 = vld [vmem:[%s1499 + $0x10] sm:$0xff]
    %v1503 = vld [vmem:[%s1499 + $0x18] sm:$0xff]
    %v1504 = vld [vmem:[%s1499 + $0x20] sm:$0xff]
    %v1505 = vld [vmem:[%s1499 + $0x28] sm:$0xff]
    %v1506 = vld [vmem:[%s1499 + $0x30] sm:$0xff]
    %v1507 = vld [vmem:[%s1499 + $0x38] sm:$0xff]
    %v1509 = vsel %vm240, %v1497, 0
    %v1512 = vsel %vm240, %v1498, 0
    %1514 = vmatprep.subr.mxu0 %v1501
    %1515 = vmatpush1.msra.mxu0 %v1500
    %1516 = vmatprep.subr.mxu0 %v1503
    %1517 = vmatpush1.msra.mxu0 %v1502
    %1518 = vmatprep.subr.mxu0 %v1505
    %1519 = vmatpush1.msra.mxu0 %v1504
    %1520 = vmatprep.subr.mxu0 %v1507
    %1521 = vmatpush1.msra.mxu0 %v1506
    %1522 = vmatprep.subr.mxu0 0.0
    %1523 = vmatpush1.msra.mxu0 0.0
    %1524 = vmatprep.subr.mxu0 0.0
    %1525 = vmatpush1.msra.mxu0 0.0
    %1526 = vmatprep.subr.mxu0 0.0
    %1527 = vmatpush1.msra.mxu0 0.0
    %1528 = vmatprep.subr.mxu0 0.0
    %1529 = vmatpush1.msra.mxu0 0.0
    %1530 = vmatprep.subr.mxu0 0.0
    %1531 = vmatpush1.msra.mxu0 0.0
    %1532 = vmatprep.subr.mxu0 0.0
    %1533 = vmatpush1.msra.mxu0 0.0
    %1534 = vmatprep.subr.mxu0 0.0
    %1535 = vmatpush1.msra.mxu0 0.0
    %1536 = vmatprep.subr.mxu0 0.0
    %1537 = vmatpush1.msra.mxu0 0.0
    %1538 = vmatprep.subr.mxu0 0.0
    %1539 = vmatpush1.msra.mxu0 0.0
    %1540 = vmatprep.subr.mxu0 0.0
    %1541 = vmatpush1.msra.mxu0 0.0
    %1542 = vmatprep.subr.mxu0 0.0
    %1543 = vmatpush1.msra.mxu0 0.0
    %1544 = vmatprep.subr.mxu0 0.0
    %1545 = vmatpush1.msra.mxu0 0.0
    %1546 = vmatprep.subr.mxu0 0.0
    %1547 = vmatpush1.msra.mxu0 0.0
    %1548 = vmatprep.subr.mxu0 0.0
    %1549 = vmatpush1.msra.mxu0 0.0
    %1550 = vmatprep.subr.mxu0 0.0
    %1551 = vmatpush1.msra.mxu0 0.0
    %1552 = vmatprep.subr.mxu0 0.0
    %1553 = vmatpush1.msra.mxu0 0.0
    %1554 = vmatprep.subr.mxu0 0.0
    %1555 = vmatpush1.msra.mxu0 0.0
    %1556 = vmatprep.subr.mxu0 0.0
    %1557 = vmatpush1.msra.mxu0 0.0
    %1558 = vmatprep.subr.mxu0 0.0
    %1559 = vmatpush1.msra.mxu0 0.0
    %1560 = vmatprep.subr.mxu0 0.0
    %1561 = vmatpush1.msra.mxu0 0.0
    %1562 = vmatprep.subr.mxu0 0.0
    %1563 = vmatpush1.msra.mxu0 0.0
    %1564 = vmatprep.subr.mxu0 0.0
    %1565 = vmatpush1.msra.mxu0 0.0
    %1566 = vmatprep.subr.mxu0 0.0
    %1567 = vmatpush1.msra.mxu0 0.0
    %1568 = vmatprep.subr.mxu0 0.0
    %1569 = vmatpush1.msra.mxu0 0.0
    %1570 = vmatprep.subr.mxu0 0.0
    %1571 = vmatpush1.msra.mxu0 0.0
    %1572 = vmatprep.subr.mxu0 0.0
    %1573 = vmatpush1.msra.mxu0 0.0
    %1574 = vmatprep.subr.mxu0 0.0
    %1575 = vmatpush1.msra.mxu0 0.0
    %1576 = vmatprep.subr.mxu0 0.0
    %1577 = vmatpush1.msra.mxu0 0.0
    %1578 = vmatprep.mubr.f32.mxu0 0.0
    %1579 = vmatmul.mubr.f32.gmra.mrb[0].mxu0 %v1509
    %v1580 = vpop.f32.mrb[0].mxu0
    %v1581 = vadd.f32 0.0, %v1580
    %v1582 = vpop.f32.mrb[0].mxu0
    %v1583 = vadd.f32 0.0, %v1582
    %1584 = vmatprep.mubr.f32.mxu0 0.0
    %1585 = vmatmul.mubr.f32.gmra.mrb[0].mxu0 %v1512
    %v1586 = vpop.f32.mrb[0].mxu0
    %v1587 = vadd.f32 0.0, %v1586
    %v1588 = vpop.f32.mrb[0].mxu0
    %v1589 = vadd.f32 0.0, %v1588
    %1590 = vdwg.mxu0
    %v1591 = vrot.slane %v1581, 6
    %v1592 = vrot.slane %v1587, 6
    %v1593 = vsel %vm326, %v1591, %v1592
    %v1594 = vsel %vm326, %v1592, %v1591
    %v1595 = vsel %vm210, %v1594, 0.0
    %v1596 = vsel %vm211, %v1593, 0.0
    %1599 = vrot.lane.b32.xlu0 %v1581, 96
    %v1600 = vpop.permute.xlu0 %1599
    %1601 = vrot.lane.b32.xlu0 %v1587, 96
    %v1602 = vpop.permute.xlu0 %1601
    %v1605 = vrot.slane %v1600, 7
    %v1606 = vrot.slane %v1602, 7
    %v1607 = vsel %vm341, %v1605, %v1606
    %v1608 = vsel %vm341, %v1606, %v1605
    %v1609 = vsel %vm216, %v1608, 0.0
    %v1610 = vsel %vm217, %v1607, 0.0
    %v1611 = vadd.f32 %v1595, %v1609
    %v1612 = vadd.f32 %v1596, %v1610
    %1613 = vrot.lane.b32.xlu0 %v1581, 64
    %v1614 = vpop.permute.xlu0 %1613
    %1615 = vrot.lane.b32.xlu0 %v1587, 64
    %v1616 = vpop.permute.xlu0 %1615
    %v1619 = vadd.f32 %v1611, %v1614
    %v1620 = vadd.f32 %v1612, %v1616
    %1621 = vrot.lane.b32.xlu0 %v1581, 32
    %v1622 = vpop.permute.xlu0 %1621
    %1623 = vrot.lane.b32.xlu0 %v1587, 32
    %v1624 = vpop.permute.xlu0 %1623
    %v1627 = vrot.slane %v1622, 1
    %v1628 = vrot.slane %v1624, 1
    %v1629 = vsel %vm364, %v1627, %v1628
    %v1630 = vsel %vm364, %v1628, %v1627
    %v1631 = vsel %vm222, %v1629, 0.0
    %v1632 = vsel %vm223, %v1630, 0.0
    %v1633 = vadd.f32 %v1619, %v1631
    %v1634 = vadd.f32 %v1620, %v1632
    %v1635 = vrot.slane %v1583, 2
    %v1636 = vrot.slane %v1589, 2
    %v1637 = vsel %vm373, %v1635, %v1636
    %v1638 = vsel %vm373, %v1636, %v1635
    %v1639 = vsel %vm228, %v1637, 0.0
    %v1640 = vsel %vm229, %v1638, 0.0
    %v1641 = vadd.f32 %v1633, %v1639
    %v1642 = vadd.f32 %v1634, %v1640
    %s1643 = scalar_lea.vmem [#allocation8], 8
    %v1644 = vld [vmem:[%s1643] sm:$0x1]
    %v1646 = vlaneseq
    %v1647 = vshrl.u32 %v1646, 7
    %v1648 = vsub.s32 0, %v1647
    %v1649 = vrot.slane %v1644, %v1648
    %v1651 = vadd.f32 %v1641, %v1649
    %v1652 = vadd.f32 %v1642, %v1649
    %v1653 = vmax.f32 %v1651, 0.0
    %v1654 = vmax.f32 %v1652, 0.0
    %s1655 = scalar_lea.vmem [#allocation7], 576
    %v1656 = vld [vmem:[%s1655] sm:$0xff]
    %v1657 = vld [vmem:[%s1655 + $0x8] sm:$0xff]
    %v1658 = vld [vmem:[%s1655 + $0x10] sm:$0xff]
    %v1659 = vld [vmem:[%s1655 + $0x18] sm:$0xff]
    %v1660 = vld [vmem:[%s1655 + $0x20] sm:$0xff]
    %v1661 = vld [vmem:[%s1655 + $0x28] sm:$0xff]
    %v1662 = vld [vmem:[%s1655 + $0x30] sm:$0xff]
    %v1663 = vld [vmem:[%s1655 + $0x38] sm:$0xff]
    %v1665 = vsel %vm240, %v1653, 0
    %v1668 = vsel %vm240, %v1654, 0
    %1670 = vmatprep.subr.mxu0 %v1657
    %1671 = vmatpush1.msra.mxu0 %v1656
    %1672 = vmatprep.subr.mxu0 %v1659
    %1673 = vmatpush1.msra.mxu0 %v1658
    %1674 = vmatprep.subr.mxu0 %v1661
    %1675 = vmatpush1.msra.mxu0 %v1660
    %1676 = vmatprep.subr.mxu0 %v1663
    %1677 = vmatpush1.msra.mxu0 %v1662
    %1678 = vmatprep.subr.mxu0 0.0
    %1679 = vmatpush1.msra.mxu0 0.0
    %1680 = vmatprep.subr.mxu0 0.0
    %1681 = vmatpush1.msra.mxu0 0.0
    %1682 = vmatprep.subr.mxu0 0.0
    %1683 = vmatpush1.msra.mxu0 0.0
    %1684 = vmatprep.subr.mxu0 0.0
    %1685 = vmatpush1.msra.mxu0 0.0
    %1686 = vmatprep.subr.mxu0 0.0
    %1687 = vmatpush1.msra.mxu0 0.0
    %1688 = vmatprep.subr.mxu0 0.0
    %1689 = vmatpush1.msra.mxu0 0.0
    %1690 = vmatprep.subr.mxu0 0.0
    %1691 = vmatpush1.msra.mxu0 0.0
    %1692 = vmatprep.subr.mxu0 0.0
    %1693 = vmatpush1.msra.mxu0 0.0
    %1694 = vmatprep.subr.mxu0 0.0
    %1695 = vmatpush1.msra.mxu0 0.0
    %1696 = vmatprep.subr.mxu0 0.0
    %1697 = vmatpush1.msra.mxu0 0.0
    %1698 = vmatprep.subr.mxu0 0.0
    %1699 = vmatpush1.msra.mxu0 0.0
    %1700 = vmatprep.subr.mxu0 0.0
    %1701 = vmatpush1.msra.mxu0 0.0
    %1702 = vmatprep.subr.mxu0 0.0
    %1703 = vmatpush1.msra.mxu0 0.0
    %1704 = vmatprep.subr.mxu0 0.0
    %1705 = vmatpush1.msra.mxu0 0.0
    %1706 = vmatprep.subr.mxu0 0.0
    %1707 = vmatpush1.msra.mxu0 0.0
    %1708 = vmatprep.subr.mxu0 0.0
    %1709 = vmatpush1.msra.mxu0 0.0
    %1710 = vmatprep.subr.mxu0 0.0
    %1711 = vmatpush1.msra.mxu0 0.0
    %1712 = vmatprep.subr.mxu0 0.0
    %1713 = vmatpush1.msra.mxu0 0.0
    %1714 = vmatprep.subr.mxu0 0.0
    %1715 = vmatpush1.msra.mxu0 0.0
    %1716 = vmatprep.subr.mxu0 0.0
    %1717 = vmatpush1.msra.mxu0 0.0
    %1718 = vmatprep.subr.mxu0 0.0
    %1719 = vmatpush1.msra.mxu0 0.0
    %1720 = vmatprep.subr.mxu0 0.0
    %1721 = vmatpush1.msra.mxu0 0.0
    %1722 = vmatprep.subr.mxu0 0.0
    %1723 = vmatpush1.msra.mxu0 0.0
    %1724 = vmatprep.subr.mxu0 0.0
    %1725 = vmatpush1.msra.mxu0 0.0
    %1726 = vmatprep.subr.mxu0 0.0
    %1727 = vmatpush1.msra.mxu0 0.0
    %1728 = vmatprep.subr.mxu0 0.0
    %1729 = vmatpush1.msra.mxu0 0.0
    %1730 = vmatprep.subr.mxu0 0.0
    %1731 = vmatpush1.msra.mxu0 0.0
    %1732 = vmatprep.subr.mxu0 0.0
    %1733 = vmatpush1.msra.mxu0 0.0
    %1734 = vmatprep.mubr.f32.mxu0 0.0
    %1735 = vmatmul.mubr.f32.gmra.mrb[0].mxu0 %v1665
    %v1736 = vpop.f32.mrb[0].mxu0
    %v1737 = vadd.f32 0.0, %v1736
    %v1738 = vpop.f32.mrb[0].mxu0
    %v1739 = vadd.f32 0.0, %v1738
    %1740 = vmatprep.mubr.f32.mxu0 0.0
    %1741 = vmatmul.mubr.f32.gmra.mrb[0].mxu0 %v1668
    %v1742 = vpop.f32.mrb[0].mxu0
    %v1743 = vadd.f32 0.0, %v1742
    %v1744 = vpop.f32.mrb[0].mxu0
    %v1745 = vadd.f32 0.0, %v1744
    %1746 = vdwg.mxu0
    %v1747 = vrot.slane %v1737, 6
    %v1748 = vrot.slane %v1743, 6
    %v1749 = vsel %vm326, %v1747, %v1748
    %v1750 = vsel %vm326, %v1748, %v1747
    %v1751 = vsel %vm210, %v1750, 0.0
    %v1752 = vsel %vm211, %v1749, 0.0
    %1755 = vrot.lane.b32.xlu0 %v1737, 96
    %v1756 = vpop.permute.xlu0 %1755
    %1757 = vrot.lane.b32.xlu0 %v1743, 96
    %v1758 = vpop.permute.xlu0 %1757
    %v1761 = vrot.slane %v1756, 7
    %v1762 = vrot.slane %v1758, 7
    %v1763 = vsel %vm341, %v1761, %v1762
    %v1764 = vsel %vm341, %v1762, %v1761
    %v1765 = vsel %vm216, %v1764, 0.0
    %v1766 = vsel %vm217, %v1763, 0.0
    %v1767 = vadd.f32 %v1751, %v1765
    %v1768 = vadd.f32 %v1752, %v1766
    %1769 = vrot.lane.b32.xlu0 %v1737, 64
    %v1770 = vpop.permute.xlu0 %1769
    %1771 = vrot.lane.b32.xlu0 %v1743, 64
    %v1772 = vpop.permute.xlu0 %1771
    %v1775 = vadd.f32 %v1767, %v1770
    %v1776 = vadd.f32 %v1768, %v1772
    %1777 = vrot.lane.b32.xlu0 %v1737, 32
    %v1778 = vpop.permute.xlu0 %1777
    %1779 = vrot.lane.b32.xlu0 %v1743, 32
    %v1780 = vpop.permute.xlu0 %1779
    %v1783 = vrot.slane %v1778, 1
    %v1784 = vrot.slane %v1780, 1
    %v1785 = vsel %vm364, %v1783, %v1784
    %v1786 = vsel %vm364, %v1784, %v1783
    %v1787 = vsel %vm222, %v1785, 0.0
    %v1788 = vsel %vm223, %v1786, 0.0
    %v1789 = vadd.f32 %v1775, %v1787
    %v1790 = vadd.f32 %v1776, %v1788
    %v1791 = vrot.slane %v1739, 2
    %v1792 = vrot.slane %v1745, 2
    %v1793 = vsel %vm373, %v1791, %v1792
    %v1794 = vsel %vm373, %v1792, %v1791
    %v1795 = vsel %vm228, %v1793, 0.0
    %v1796 = vsel %vm229, %v1794, 0.0
    %v1797 = vadd.f32 %v1789, %v1795
    %v1798 = vadd.f32 %v1790, %v1796
    %s1799 = scalar_lea.vmem [#allocation8], 9
    %v1800 = vld [vmem:[%s1799] sm:$0x1]
    %v1802 = vlaneseq
    %v1803 = vshrl.u32 %v1802, 7
    %v1804 = vsub.s32 0, %v1803
    %v1805 = vrot.slane %v1800, %v1804
    %v1807 = vadd.f32 %v1797, %v1805
    %v1808 = vadd.f32 %v1798, %v1805
    %v1809 = vmul.f32 %v1807, 0.3
    %v1810 = vmul.f32 %v1808, 0.3
    %v1811 = vadd.f32 %v1495, %v1809
    %v1812 = vadd.f32 %v1496, %v1810
    %v1813 = vld [vmem:[%s5] sm:$0xff]
    %v1814 = vld [vmem:[%s5 + $0x8] sm:$0xff]
    %v1815 = vmul.f32 %v1811, %v1813
    %v1816 = vmul.f32 %v1812, %v1814
    %v1817 = vld [vmem:[%s6] sm:$0x3]
    %v1819 = vsel %vm97, %v1817, 0
    %1821 = vmatprep.subr.mxu0 0.0
    %1822 = vmatpush1.msra.mxu0 %v1815
    %1823 = vmatprep.subr.mxu0 0.0
    %1824 = vmatpush1.msra.mxu0 %v1816
    %1825 = vmatprep.subr.mxu0 0.0
    %1826 = vmatpush1.msra.mxu0 0.0
    %1827 = vmatprep.subr.mxu0 0.0
    %1828 = vmatpush1.msra.mxu0 0.0
    %1829 = vmatprep.subr.mxu0 0.0
    %1830 = vmatpush1.msra.mxu0 0.0
    %1831 = vmatprep.subr.mxu0 0.0
    %1832 = vmatpush1.msra.mxu0 0.0
    %1833 = vmatprep.subr.mxu0 0.0
    %1834 = vmatpush1.msra.mxu0 0.0
    %1835 = vmatprep.subr.mxu0 0.0
    %1836 = vmatpush1.msra.mxu0 0.0
    %1837 = vmatprep.subr.mxu0 0.0
    %1838 = vmatpush1.msra.mxu0 0.0
    %1839 = vmatprep.subr.mxu0 0.0
    %1840 = vmatpush1.msra.mxu0 0.0
    %1841 = vmatprep.subr.mxu0 0.0
    %1842 = vmatpush1.msra.mxu0 0.0
    %1843 = vmatprep.subr.mxu0 0.0
    %1844 = vmatpush1.msra.mxu0 0.0
    %1845 = vmatprep.subr.mxu0 0.0
    %1846 = vmatpush1.msra.mxu0 0.0
    %1847 = vmatprep.subr.mxu0 0.0
    %1848 = vmatpush1.msra.mxu0 0.0
    %1849 = vmatprep.subr.mxu0 0.0
    %1850 = vmatpush1.msra.mxu0 0.0
    %1851 = vmatprep.subr.mxu0 0.0
    %1852 = vmatpush1.msra.mxu0 0.0
    %1853 = vmatprep.subr.mxu0 0.0
    %1854 = vmatpush1.msra.mxu0 0.0
    %1855 = vmatprep.subr.mxu0 0.0
    %1856 = vmatpush1.msra.mxu0 0.0
    %1857 = vmatprep.subr.mxu0 0.0
    %1858 = vmatpush1.msra.mxu0 0.0
    %1859 = vmatprep.subr.mxu0 0.0
    %1860 = vmatpush1.msra.mxu0 0.0
    %1861 = vmatprep.subr.mxu0 0.0
    %1862 = vmatpush1.msra.mxu0 0.0
    %1863 = vmatprep.subr.mxu0 0.0
    %1864 = vmatpush1.msra.mxu0 0.0
    %1865 = vmatprep.subr.mxu0 0.0
    %1866 = vmatpush1.msra.mxu0 0.0
    %1867 = vmatprep.subr.mxu0 0.0
    %1868 = vmatpush1.msra.mxu0 0.0
    %1869 = vmatprep.subr.mxu0 0.0
    %1870 = vmatpush1.msra.mxu0 0.0
    %1871 = vmatprep.subr.mxu0 0.0
    %1872 = vmatpush1.msra.mxu0 0.0
    %1873 = vmatprep.subr.mxu0 0.0
    %1874 = vmatpush1.msra.mxu0 0.0
    %1875 = vmatprep.subr.mxu0 0.0
    %1876 = vmatpush1.msra.mxu0 0.0
    %1877 = vmatprep.subr.mxu0 0.0
    %1878 = vmatpush1.msra.mxu0 0.0
    %1879 = vmatprep.subr.mxu0 0.0
    %1880 = vmatpush1.msra.mxu0 0.0
    %1881 = vmatprep.subr.mxu0 0.0
    %1882 = vmatpush1.msra.mxu0 0.0
    %1883 = vmatprep.subr.mxu0 0.0
    %1884 = vmatpush1.msra.mxu0 0.0
    %1885 = vmatprep.mubr.f32.mxu0 0.0
    %1886 = vmatmul.mubr.f32.gmra.mrb[0].mxu0 %v1819
    %v1887 = vpop.f32.mrb[0].mxu0
    %v1888 = vadd.f32 0.0, %v1887
    %v1889 = vpop.f32.mrb[0].mxu0
    %1890 = vdwg.mxu0
    %vm1891 = vcmask 254976
    %v1892 = vsel %vm1891, %v1888, 0.0
    %1893 = vadd.xlane.f32.xlu0 %v1892
    %v1894 = vpop.xlane.xlu0 %1893
    %v1895 = vld [vmem:[#allocation2] sm:$0x1]
    %v1897 = vlaneseq
    %v1898 = vshrl.u32 %v1897, 7
    %v1899 = vsub.s32 0, %v1898
    %v1900 = vrot.slane %v1895, %v1899
    %v1902 = vadd.f32 %v1894, %v1900
    %vm1903 = vcmask 1024
    %1904 = vst.msk [vmem:[%s8] sm:$0x3] %vm1903, %v1902
    // Predicated region
    $region50: #{tpu_custom_call.1} parent=1 // pred_check
      _
    $region51: #{tpu_custom_call.1} parent=1 // pred_check_branch
      %1906 = sbr.rel (0) target = $region53
    $region52: #{tpu_custom_call.1} parent=1 // pred_region
      _
    $region53: #{tpu_custom_call.1} parent=1 // pred_fallthru
      _
    // Predicated region
    $region54: #{tpu_custom_call.1} parent=1 // pred_check
      _
    $region55: #{tpu_custom_call.1} parent=1 // pred_check_branch
      %1908 = sbr.rel (0) target = $region57
    $region56: #{tpu_custom_call.1} parent=1 // pred_region
      _
    $region57: #{tpu_custom_call.1} parent=1 // pred_fallthru
      _
    %1909 = vsyncpa [#allocation4], 1
    %1910 = vsyncpa [#allocation6], 1
    %1911 = vsyncpa [#allocation9], 1

</llo_original>
